<compile_context>
chip_gen: v6e
topology: v6e:2x2x1
jax: 0.10.0
libtpu: 0.0.40
codegen_flags: <defaults>
</compile_context>

<pallas_src>
import functools

import jax
import jax.numpy as jnp
import numpy as np
from jax import lax
from jax.experimental import pallas as pl
from jax.experimental.pallas import tpu as pltpu


def _fused_decoder_kernel(step_ref, h0_ref, c0_ref, enc_ref,
                          wa_s_ref, wa_h_ref, wc_s_ref, wc_a_ref,
                          w_ih_ref, w_hh_ref, w_out_ref,
                          b_a_ref, b_c_ref, b_l_ref, b_out_ref,
                          logp_ref, attn_ref, h_out_ref, c_out_ref):
    """Whole teacher-forced decode (T steps) in a single kernel invocation."""
    f32 = jnp.float32
    bf16 = jnp.bfloat16
    T, B, _ = step_ref.shape
    Hd = h0_ref.shape[1]
    Ld = enc_ref.shape[1]
    Od = w_out_ref.shape[1]

    # Loaded once; resident for all (unrolled) timesteps.
    wa_s = wa_s_ref[...]                 # (E+2, L)  bf16
    wa_h = wa_h_ref[...]                 # (H,   L)  bf16
    wc_s = wc_s_ref[...]                 # (E+2, H)  bf16
    wc_a = wc_a_ref[...]                 # (H,   H)  bf16
    w_ih = w_ih_ref[...]                 # (H,  4H)  bf16
    w_hh = w_hh_ref[...]                 # (H,  4H)  bf16
    w_out = w_out_ref[...]               # (H,   O)  bf16
    enc = enc_ref[...]                   # (B, L, H) bf16
    # Hoist bias broadcasts out of the unrolled loop (JAX does not CSE them).
    b_a = jnp.broadcast_to(b_a_ref[...], (B, Ld))
    b_c = jnp.broadcast_to(b_c_ref[...], (B, Hd))
    b_l = jnp.broadcast_to(b_l_ref[...], (B, 4 * Hd))
    b_o = jnp.broadcast_to(b_out_ref[...], (B, Od))

    def body(t, carry):
        h, c = carry                     # f32 (B, H) recurrent state
        step = step_ref[t]               # (B, E+2) bf16  [emb | pos]
        h_b = h.astype(bf16)

        # ---- attention scores + softmax (split matmuls + VPU bias add) ----
        scores = (jnp.dot(step, wa_s, preferred_element_type=f32)
                  + jnp.dot(h_b, wa_h, preferred_element_type=f32) + b_a)
        scores = scores - jnp.max(scores, axis=1, keepdims=True)
        es = jnp.exp(scores)
        attn_w = es * pl.reciprocal(jnp.sum(es, axis=1, keepdims=True),
                                    approx=True)                      # (B, L)

        # ---- bmm(attn_weights, encoder_outputs) -> (B, H) on the MXU ----
        applied = jnp.einsum('bql,blh->bqh',
                             attn_w[:, None, :].astype(bf16), enc,
                             preferred_element_type=f32)[:, 0, :]     # (B, H)

        # ---- attn_combine + ReLU ----
        x = jnp.maximum(
            jnp.dot(step, wc_s, preferred_element_type=f32)
            + jnp.dot(applied.astype(bf16), wc_a, preferred_element_type=f32)
            + b_c, 0.0)

        # ---- LSTM cell, gate order i, f, g, o ----
        gates = (jnp.dot(x.astype(bf16), w_ih, preferred_element_type=f32)
                 + jnp.dot(h_b, w_hh, preferred_element_type=f32) + b_l)
        sig = jax.nn.sigmoid(gates)      # one EUP pass over the full tile
        i_g = sig[:, 0 * Hd:1 * Hd]
        f_g = sig[:, 1 * Hd:2 * Hd]
        o_g = sig[:, 3 * Hd:4 * Hd]
        g_g = jnp.tanh(gates[:, 2 * Hd:3 * Hd])
        c_new = f_g * c + i_g * g_g
        h_new = o_g * jnp.tanh(c_new)

        # ---- out linear + log_softmax ----
        logits = jnp.dot(h_new.astype(bf16), w_out,
                         preferred_element_type=f32) + b_o
        z = logits - jnp.max(logits, axis=1, keepdims=True)
        logp = z - jnp.log(jnp.sum(jnp.exp(z), axis=1, keepdims=True))

        # Per-field direct stores into the VMEM-resident output slabs.
        logp_ref[t] = logp
        attn_ref[t] = attn_w
        return h_new, c_new

    h_fin, c_fin = lax.fori_loop(0, T, body, (h0_ref[...], c0_ref[...]),
                                 unroll=True)
    h_out_ref[...] = h_fin
    c_out_ref[...] = c_fin


def pack_params(params):
    """Split/cast the module weights for the fused kernel (done once)."""
    f32, bf16 = jnp.float32, jnp.bfloat16
    _, L = params["w_attn_e"].shape
    # attention sees only [emb]; position rows of Wa_s are zero.
    wa_s = jnp.concatenate([params["w_attn_e"], jnp.zeros((2, L), f32)], axis=0)
    # attn_combine sees [emb | pos] through Wc_s and `applied` through Wc_a.
    wc_s = jnp.concatenate([params["w_comb_e"], params["w_comb_p"]], axis=0)
    return {
        "wa_s": wa_s.astype(bf16),
        "wa_h": params["w_attn_h"].astype(bf16),
        "wc_s": wc_s.astype(bf16),
        "wc_a": params["w_comb_a"].astype(bf16),
        "w_ih": params["w_ih"].astype(bf16),
        "w_hh": params["w_hh"].astype(bf16),
        "w_out": params["w_out"].astype(bf16),
        "b_a": params["b_attn"].astype(f32),
        "b_c": params["b_comb"].astype(f32),
        "b_l": (params["b_ih"] + params["b_hh"]).astype(f32),
        "b_out": params["b_out"].astype(f32),
    }


def attn_decoder_decode(params, packed, token_seq, hidden, encoder_outputs,
                        position_seq):
    """Run T decoder steps (teacher-forced inputs) in ONE grid-less pallas_call.

    token_seq: (B, T) int32, position_seq: (B, T, 2), hidden: ((B,H),(B,H)),
    encoder_outputs: (B, L, H).
    Returns: log_probs (B,T,O), (h_T, c_T), attn_weights (B,T,L).
    """
    h0, c0 = hidden
    B, T = token_seq.shape
    Hd = h0.shape[1]
    Ld = encoder_outputs.shape[1]
    Od = packed["w_out"].shape[1]
    E = params["embedding"].shape[1]
    SIN = E + 2                                    # [emb | pos]

    # Glue (plain JAX): embedding gather + per-step input packing [emb | pos].
    emb = params["embedding"][token_seq]                            # (B, T, E)
    step = jnp.concatenate([emb, position_seq.astype(jnp.float32)], axis=-1)
    step = jnp.transpose(step, (1, 0, 2)).astype(jnp.bfloat16)      # (T, B, SIN)
    enc = encoder_outputs.astype(jnp.bfloat16)

    cost = pl.CostEstimate(
        flops=int(2 * T * B * (SIN * Ld + Hd * Ld + Ld * Hd + SIN * Hd
                               + Hd * Hd + 8 * Hd * Hd + Hd * Od)),
        transcendentals=int(T * B * (Ld + Od + 6 * Hd)),
        bytes_accessed=int(
            2 * (step.size + enc.size)
            + 2 * sum(int(packed[k].size) for k in
                      ("wa_s", "wa_h", "wc_s", "wc_a", "w_ih", "w_hh", "w_out"))
            + 4 * sum(int(packed[k].size) for k in ("b_a", "b_c", "b_l", "b_out"))
            + 4 * (h0.size + c0.size)
            + 4 * (T * B * (Od + Ld) + 2 * B * Hd)),
    )

    def vmem():
        return pl.BlockSpec(memory_space=pltpu.MemorySpace.VMEM)

    logp, attn_w, h_new, c_new = pl.pallas_call(
        _fused_decoder_kernel,
        in_specs=[vmem() for _ in range(15)],
        out_specs=(vmem(), vmem(), vmem(), vmem()),
        out_shape=(
            jax.ShapeDtypeStruct((T, B, Od), jnp.float32),   # log_probs
            jax.ShapeDtypeStruct((T, B, Ld), jnp.float32),   # attn weights
            jax.ShapeDtypeStruct((B, Hd), jnp.float32),      # final h
            jax.ShapeDtypeStruct((B, Hd), jnp.float32),      # final c
        ),
        cost_estimate=cost,
    )(step, h0, c0, enc,
      packed["wa_s"], packed["wa_h"], packed["wc_s"], packed["wc_a"],
      packed["w_ih"], packed["w_hh"], packed["w_out"],
      packed["b_a"], packed["b_c"], packed["b_l"], packed["b_out"])

    return (jnp.transpose(logp, (1, 0, 2)), (h_new, c_new),
            jnp.transpose(attn_w, (1, 0, 2)))


def attn_decoder_forward(params, packed, input_ids, hidden, encoder_outputs,
                         position):
    """Module-equivalent single decoder step (AttnDecoderRNN.forward, eval)."""
    logp, (h, c), attn = attn_decoder_decode(
        params, packed, input_ids, hidden, encoder_outputs, position[:, None, :])
    return logp[:, 0], (h, c), attn[:, 0]


# ----------------------------- pure-JAX reference -----------------------------
def _reference_step(params, token_ids, hidden, encoder_outputs, position):
    h, c = hidden
    emb = params["embedding"][token_ids]
    scores = emb @ params["w_attn_e"] + h @ params["w_attn_h"] + params["b_attn"]
    attn_w = jax.nn.softmax(scores, axis=1)
    applied = jnp.einsum("bl,blh->bh", attn_w, encoder_outputs)
    comb = (emb @ params["w_comb_e"] + applied @ params["w_comb_a"]
            + position @ params["w_comb_p"] + params["b_comb"])
    x = jax.nn.relu(comb)
    gates = x @ params["w_ih"] + params["b_ih"] + h @ params["w_hh"] + params["b_hh"]
    H = h.shape[1]
    i_g = jax.nn.sigmoid(gates[:, :H])
    f_g = jax.nn.sigmoid(gates[:, H:2 * H])
    g_g = jnp.tanh(gates[:, 2 * H:3 * H])
    o_g = jax.nn.sigmoid(gates[:, 3 * H:])
    c_new = f_g * c + i_g * g_g
    h_new = o_g * jnp.tanh(c_new)
    logits = h_new @ params["w_out"] + params["b_out"]
    return jax.nn.log_softmax(logits, axis=1), (h_new, c_new), attn_w


def _reference_decode(params, token_seq, hidden, encoder_outputs, position_seq):
    _, T = token_seq.shape
    h, c = hidden
    logps, attns = [], []
    for t in range(T):
        lp, (h, c), aw = _reference_step(params, token_seq[:, t], (h, c),
                                         encoder_outputs, position_seq[:, t])
        logps.append(lp)
        attns.append(aw)
    return jnp.stack(logps, axis=1), (h, c), jnp.stack(attns, axis=1)


def make_params(key, vocab_size, embed_size, hidden_size, output_size, max_length):
    ks = jax.random.split(key, 12)
    s = 0.1
    return {
        "embedding": jax.random.normal(ks[0], (vocab_size, embed_size), jnp.float32) * s,
        "w_attn_e": jax.random.normal(ks[1], (embed_size, max_length), jnp.float32) * s,
        "w_attn_h": jax.random.normal(ks[2], (hidden_size, max_length), jnp.float32) * s,
        "b_attn":   jax.random.normal(ks[3], (1, max_length), jnp.float32) * s,
        "w_comb_e": jax.random.normal(ks[4], (embed_size, hidden_size), jnp.float32) * s,
        "w_comb_a": jax.random.normal(ks[5], (hidden_size, hidden_size), jnp.float32) * s,
        "w_comb_p": jax.random.normal(ks[6], (2, hidden_size), jnp.float32) * s,
        "b_comb":   jax.random.normal(ks[7], (1, hidden_size), jnp.float32) * s,
        "w_ih": jax.random.normal(ks[8], (hidden_size, 4 * hidden_size), jnp.float32) * s,
        "w_hh": jax.random.normal(ks[9], (hidden_size, 4 * hidden_size), jnp.float32) * s,
        "b_ih": jnp.zeros((1, 4 * hidden_size), jnp.float32),
        "b_hh": jnp.zeros((1, 4 * hidden_size), jnp.float32),
        "w_out": jax.random.normal(ks[10], (hidden_size, output_size), jnp.float32) * s,
        "b_out": jax.random.normal(ks[11], (1, output_size), jnp.float32) * s,
    }


if __name__ == "__main__":
    B, E, H, L, V, O, T = 8, 16, 32, 32, 40, 48, 8

    key = jax.random.PRNGKey(0)
    k_par, k_tok, k_h, k_c, k_enc, k_pos = jax.random.split(key, 6)

    params = make_params(k_par, V, E, H, O, L)
    packed = pack_params(params)

    token_seq = jax.random.randint(k_tok, (B, T), 0, V, dtype=jnp.int32)
    h0 = jax.random.normal(k_h, (B, H), jnp.float32)
    c0 = jax.random.normal(k_c, (B, H), jnp.float32)
    encoder_outputs = jax.random.normal(k_enc, (B, L, H), jnp.float32)
    position_seq = jax.random.normal(k_pos, (B, T, 2), jnp.float32)

    tol = dict(atol=2e-2, rtol=2e-2)

    # ---- single-step (module-equivalent forward) ----
    step_fn = jax.jit(functools.partial(attn_decoder_forward, params, packed))
    lp1, (h1, c1), aw1 = step_fn(token_seq[:, :1], (h0, c0),
                                 encoder_outputs, position_seq[:, 0])
    jax.block_until_ready((lp1, h1, c1, aw1))
    ref_lp1, (ref_h1, ref_c1), ref_aw1 = _reference_step(
        params, token_seq[:, 0], (h0, c0), encoder_outputs, position_seq[:, 0])
    np.testing.assert_allclose(np.asarray(lp1), np.asarray(ref_lp1), **tol)
    np.testing.assert_allclose(np.asarray(h1), np.asarray(ref_h1), **tol)
    np.testing.assert_allclose(np.asarray(c1), np.asarray(ref_c1), **tol)
    np.testing.assert_allclose(np.asarray(aw1), np.asarray(ref_aw1), **tol)

    # ---- fused T-step decode: one grid-less pallas_call, all VMEM-resident ----
    decode_fn = jax.jit(functools.partial(attn_decoder_decode, params, packed))
    lp, (hT, cT), aw = decode_fn(token_seq, (h0, c0), encoder_outputs, position_seq)
    jax.block_until_ready((lp, hT, cT, aw))
    ref_lp, (ref_hT, ref_cT), ref_aw = _reference_decode(
        params, token_seq, (h0, c0), encoder_outputs, position_seq)
    np.testing.assert_allclose(np.asarray(lp), np.asarray(ref_lp), **tol)
    np.testing.assert_allclose(np.asarray(hT), np.asarray(ref_hT), **tol)
    np.testing.assert_allclose(np.asarray(cT), np.asarray(ref_cT), **tol)
    np.testing.assert_allclose(np.asarray(aw), np.asarray(ref_aw), **tol)

    print("KERNEL_OK")
</pallas_src>

<mosaic_0001>
module attributes {stable_mosaic.version = 11 : i64} {
  func.func @_fused_decoder_kernel(%arg0: memref<1x8x18xbf16, #tpu.memory_space<vmem>>, %arg1: memref<8x32xf32, #tpu.memory_space<vmem>>, %arg2: memref<8x32xf32, #tpu.memory_space<vmem>>, %arg3: memref<8x32x32xbf16, #tpu.memory_space<vmem>>, %arg4: memref<18x32xbf16, #tpu.memory_space<vmem>>, %arg5: memref<32x32xbf16, #tpu.memory_space<vmem>>, %arg6: memref<18x32xbf16, #tpu.memory_space<vmem>>, %arg7: memref<32x32xbf16, #tpu.memory_space<vmem>>, %arg8: memref<32x128xbf16, #tpu.memory_space<vmem>>, %arg9: memref<32x128xbf16, #tpu.memory_space<vmem>>, %arg10: memref<32x48xbf16, #tpu.memory_space<vmem>>, %arg11: memref<1x32xf32, #tpu.memory_space<vmem>>, %arg12: memref<1x32xf32, #tpu.memory_space<vmem>>, %arg13: memref<1x128xf32, #tpu.memory_space<vmem>>, %arg14: memref<1x48xf32, #tpu.memory_space<vmem>>, %arg15: memref<1x8x48xf32, #tpu.memory_space<vmem>>, %arg16: memref<1x8x32xf32, #tpu.memory_space<vmem>>, %arg17: memref<8x32xf32, #tpu.memory_space<vmem>>, %arg18: memref<8x32xf32, #tpu.memory_space<vmem>>) attributes {dimension_semantics = [], scalar_prefetch = 0 : i64, scratch_operands = 0 : i64, tpu.core_type = #tpu.core_type<tc>} {
    %c0 = arith.constant 0 : index
    %c0_0 = arith.constant 0 : index
    %0 = vector.load %arg4[%c0, %c0_0] : memref<18x32xbf16, #tpu.memory_space<vmem>>, vector<18x32xbf16>
    %c0_1 = arith.constant 0 : index
    %c0_2 = arith.constant 0 : index
    %1 = vector.load %arg5[%c0_1, %c0_2] : memref<32x32xbf16, #tpu.memory_space<vmem>>, vector<32x32xbf16>
    %c0_3 = arith.constant 0 : index
    %c0_4 = arith.constant 0 : index
    %2 = vector.load %arg6[%c0_3, %c0_4] : memref<18x32xbf16, #tpu.memory_space<vmem>>, vector<18x32xbf16>
    %c0_5 = arith.constant 0 : index
    %c0_6 = arith.constant 0 : index
    %3 = vector.load %arg7[%c0_5, %c0_6] : memref<32x32xbf16, #tpu.memory_space<vmem>>, vector<32x32xbf16>
    %c0_7 = arith.constant 0 : index
    %c0_8 = arith.constant 0 : index
    %4 = vector.load %arg8[%c0_7, %c0_8] : memref<32x128xbf16, #tpu.memory_space<vmem>>, vector<32x128xbf16>
    %c0_9 = arith.constant 0 : index
    %c0_10 = arith.constant 0 : index
    %5 = vector.load %arg9[%c0_9, %c0_10] : memref<32x128xbf16, #tpu.memory_space<vmem>>, vector<32x128xbf16>
    %c0_11 = arith.constant 0 : index
    %c0_12 = arith.constant 0 : index
    %6 = vector.load %arg10[%c0_11, %c0_12] : memref<32x48xbf16, #tpu.memory_space<vmem>>, vector<32x48xbf16>
    %c0_13 = arith.constant 0 : index
    %c0_14 = arith.constant 0 : index
    %c0_15 = arith.constant 0 : index
    %7 = vector.load %arg3[%c0_13, %c0_14, %c0_15] : memref<8x32x32xbf16, #tpu.memory_space<vmem>>, vector<8x32x32xbf16>
    %c0_16 = arith.constant 0 : index
    %c0_17 = arith.constant 0 : index
    %8 = vector.load %arg11[%c0_16, %c0_17] : memref<1x32xf32, #tpu.memory_space<vmem>>, vector<1x32xf32>
    %9 = vector.shape_cast %8 : vector<1x32xf32> to vector<1x32xf32>
    %10 = vector.broadcast %9 : vector<1x32xf32> to vector<8x32xf32>
    %c0_18 = arith.constant 0 : index
    %c0_19 = arith.constant 0 : index
    %11 = vector.load %arg12[%c0_18, %c0_19] : memref<1x32xf32, #tpu.memory_space<vmem>>, vector<1x32xf32>
    %12 = vector.shape_cast %11 : vector<1x32xf32> to vector<1x32xf32>
    %13 = vector.broadcast %12 : vector<1x32xf32> to vector<8x32xf32>
    %c0_20 = arith.constant 0 : index
    %c0_21 = arith.constant 0 : index
    %14 = vector.load %arg13[%c0_20, %c0_21] : memref<1x128xf32, #tpu.memory_space<vmem>>, vector<1x128xf32>
    %15 = vector.shape_cast %14 : vector<1x128xf32> to vector<1x128xf32>
    %16 = vector.broadcast %15 : vector<1x128xf32> to vector<8x128xf32>
    %c0_22 = arith.constant 0 : index
    %c0_23 = arith.constant 0 : index
    %17 = vector.load %arg14[%c0_22, %c0_23] : memref<1x48xf32, #tpu.memory_space<vmem>>, vector<1x48xf32>
    %18 = vector.shape_cast %17 : vector<1x48xf32> to vector<1x48xf32>
    %19 = vector.broadcast %18 : vector<1x48xf32> to vector<8x48xf32>
    %c0_24 = arith.constant 0 : index
    %c0_25 = arith.constant 0 : index
    %20 = vector.load %arg1[%c0_24, %c0_25] : memref<8x32xf32, #tpu.memory_space<vmem>>, vector<8x32xf32>
    %c0_26 = arith.constant 0 : index
    %c0_27 = arith.constant 0 : index
    %21 = vector.load %arg2[%c0_26, %c0_27] : memref<8x32xf32, #tpu.memory_space<vmem>>, vector<8x32xf32>
    %c0_i32 = arith.constant 0 : i32
    %22 = arith.index_cast %c0_i32 : i32 to index
    %c0_28 = arith.constant 0 : index
    %c0_29 = arith.constant 0 : index
    %23 = vector.load %arg0[%22, %c0_28, %c0_29] : memref<1x8x18xbf16, #tpu.memory_space<vmem>>, vector<1x8x18xbf16>
    %24 = vector.shape_cast %23 : vector<1x8x18xbf16> to vector<8x18xbf16>
    %25 = arith.truncf %20 : vector<8x32xf32> to vector<8x32xbf16>
    %cst = arith.constant dense<0.000000e+00> : vector<8x32xf32>
    %26 = tpu.matmul %24, %0, %cst {dimension_numbers = #tpu.dot_dimension_numbers<[1], [0], [0], [1], [0, 0, 1, 1], [], []>} : vector<8x18xbf16>, vector<18x32xbf16>, vector<8x32xf32> -> vector<8x32xf32>
    %cst_30 = arith.constant dense<0.000000e+00> : vector<8x32xf32>
    %27 = tpu.matmul %25, %1, %cst_30 {dimension_numbers = #tpu.dot_dimension_numbers<[1], [0], [0], [1], [0, 0, 1, 1], [], []>} : vector<8x32xbf16>, vector<32x32xbf16>, vector<8x32xf32> -> vector<8x32xf32>
    %28 = arith.addf %26, %27 : vector<8x32xf32>
    %29 = arith.addf %28, %10 : vector<8x32xf32>
    %cst_31 = arith.constant dense<0xFF800000> : vector<8xf32>
    %30 = vector.multi_reduction <maximumf>, %29, %cst_31 [1] : vector<8x32xf32> to vector<8xf32>
    %31 = vector.shape_cast %30 : vector<8xf32> to vector<8x1xf32>
    %32 = vector.broadcast %31 : vector<8x1xf32> to vector<8x32xf32>
    %33 = arith.subf %29, %32 : vector<8x32xf32>
    %34 = math.exp %33 : vector<8x32xf32>
    %cst_32 = arith.constant dense<0.000000e+00> : vector<8xf32>
    %35 = vector.multi_reduction <add>, %34, %cst_32 [1] : vector<8x32xf32> to vector<8xf32>
    %36 = vector.shape_cast %35 : vector<8xf32> to vector<8x1xf32>
    %37 = tpu.reciprocal %36 {approx = true} : vector<8x1xf32> -> vector<8x1xf32>
    %38 = vector.broadcast %37 : vector<8x1xf32> to vector<8x32xf32>
    %39 = arith.mulf %34, %38 : vector<8x32xf32>
    %40 = vector.shape_cast %39 : vector<8x32xf32> to vector<8x1x32xf32>
    %41 = arith.truncf %40 : vector<8x1x32xf32> to vector<8x1x32xbf16>
    "tpu.trace_start"() <{level = 10 : i32, message = "bql,blh->bqh"}> : () -> ()
    %cst_33 = arith.constant dense<0.000000e+00> : vector<8x1x32xf32>
    %42 = tpu.matmul %41, %7, %cst_33 {dimension_numbers = #tpu.dot_dimension_numbers<[2], [1], [1], [2], [0, 0, 0, 1, 1, 2], [0], [0]>} : vector<8x1x32xbf16>, vector<8x32x32xbf16>, vector<8x1x32xf32> -> vector<8x1x32xf32>
    "tpu.trace_stop"() : () -> ()
    %43 = vector.shape_cast %42 : vector<8x1x32xf32> to vector<8x32xf32>
    %cst_34 = arith.constant dense<0.000000e+00> : vector<8x32xf32>
    %44 = tpu.matmul %24, %2, %cst_34 {dimension_numbers = #tpu.dot_dimension_numbers<[1], [0], [0], [1], [0, 0, 1, 1], [], []>} : vector<8x18xbf16>, vector<18x32xbf16>, vector<8x32xf32> -> vector<8x32xf32>
    %45 = arith.truncf %43 : vector<8x32xf32> to vector<8x32xbf16>
    %cst_35 = arith.constant dense<0.000000e+00> : vector<8x32xf32>
    %46 = tpu.matmul %45, %3, %cst_35 {dimension_numbers = #tpu.dot_dimension_numbers<[1], [0], [0], [1], [0, 0, 1, 1], [], []>} : vector<8x32xbf16>, vector<32x32xbf16>, vector<8x32xf32> -> vector<8x32xf32>
    %47 = arith.addf %44, %46 : vector<8x32xf32>
    %48 = arith.addf %47, %13 : vector<8x32xf32>
    %cst_36 = arith.constant 0.000000e+00 : f32
    %49 = vector.broadcast %cst_36 : f32 to vector<8x32xf32>
    %50 = arith.maximumf %48, %49 : vector<8x32xf32>
    %51 = arith.truncf %50 : vector<8x32xf32> to vector<8x32xbf16>
    %cst_37 = arith.constant dense<0.000000e+00> : vector<8x128xf32>
    %52 = tpu.matmul %51, %4, %cst_37 {dimension_numbers = #tpu.dot_dimension_numbers<[1], [0], [0], [1], [0, 0, 1, 1], [], []>} : vector<8x32xbf16>, vector<32x128xbf16>, vector<8x128xf32> -> vector<8x128xf32>
    %cst_38 = arith.constant dense<0.000000e+00> : vector<8x128xf32>
    %53 = tpu.matmul %25, %5, %cst_38 {dimension_numbers = #tpu.dot_dimension_numbers<[1], [0], [0], [1], [0, 0, 1, 1], [], []>} : vector<8x32xbf16>, vector<32x128xbf16>, vector<8x128xf32> -> vector<8x128xf32>
    %54 = arith.addf %52, %53 : vector<8x128xf32>
    %55 = arith.addf %54, %16 : vector<8x128xf32>
    %56 = arith.negf %55 : vector<8x128xf32>
    %57 = math.exp %56 : vector<8x128xf32>
    %cst_39 = arith.constant 1.000000e+00 : f32
    %58 = vector.broadcast %cst_39 : f32 to vector<8x128xf32>
    %59 = arith.addf %58, %57 : vector<8x128xf32>
    %60 = arith.divf %58, %59 : vector<8x128xf32>
    %61 = vector.extract_strided_slice %60 {offsets = [0, 0], sizes = [8, 32], strides = [1, 1]} : vector<8x128xf32> to vector<8x32xf32>
    %62 = vector.extract_strided_slice %60 {offsets = [0, 32], sizes = [8, 32], strides = [1, 1]} : vector<8x128xf32> to vector<8x32xf32>
    %63 = vector.extract_strided_slice %60 {offsets = [0, 96], sizes = [8, 32], strides = [1, 1]} : vector<8x128xf32> to vector<8x32xf32>
    %64 = vector.extract_strided_slice %55 {offsets = [0, 64], sizes = [8, 32], strides = [1, 1]} : vector<8x128xf32> to vector<8x32xf32>
    %65 = math.tanh %64 : vector<8x32xf32>
    %66 = arith.mulf %62, %21 : vector<8x32xf32>
    %67 = arith.mulf %61, %65 : vector<8x32xf32>
    %68 = arith.addf %66, %67 : vector<8x32xf32>
    %69 = math.tanh %68 : vector<8x32xf32>
    %70 = arith.mulf %63, %69 : vector<8x32xf32>
    %71 = arith.truncf %70 : vector<8x32xf32> to vector<8x32xbf16>
    %cst_40 = arith.constant dense<0.000000e+00> : vector<8x48xf32>
    %72 = tpu.matmul %71, %6, %cst_40 {dimension_numbers = #tpu.dot_dimension_numbers<[1], [0], [0], [1], [0, 0, 1, 1], [], []>} : vector<8x32xbf16>, vector<32x48xbf16>, vector<8x48xf32> -> vector<8x48xf32>
    %73 = arith.addf %72, %19 : vector<8x48xf32>
    %cst_41 = arith.constant dense<0xFF800000> : vector<8xf32>
    %74 = vector.multi_reduction <maximumf>, %73, %cst_41 [1] : vector<8x48xf32> to vector<8xf32>
    %75 = vector.shape_cast %74 : vector<8xf32> to vector<8x1xf32>
    %76 = vector.broadcast %75 : vector<8x1xf32> to vector<8x48xf32>
    %77 = arith.subf %73, %76 : vector<8x48xf32>
    %78 = math.exp %77 : vector<8x48xf32>
    %cst_42 = arith.constant dense<0.000000e+00> : vector<8xf32>
    %79 = vector.multi_reduction <add>, %78, %cst_42 [1] : vector<8x48xf32> to vector<8xf32>
    %80 = vector.shape_cast %79 : vector<8xf32> to vector<8x1xf32>
    %81 = math.log %80 : vector<8x1xf32>
    %82 = vector.broadcast %81 : vector<8x1xf32> to vector<8x48xf32>
    %83 = arith.subf %77, %82 : vector<8x48xf32>
    %84 = arith.index_cast %c0_i32 : i32 to index
    %c0_43 = arith.constant 0 : index
    %c0_44 = arith.constant 0 : index
    %85 = vector.load %arg15[%84, %c0_43, %c0_44] : memref<1x8x48xf32, #tpu.memory_space<vmem>>, vector<1x8x48xf32>
    %86 = vector.shape_cast %85 : vector<1x8x48xf32> to vector<8x48xf32>
    %87 = vector.shape_cast %83 : vector<8x48xf32> to vector<1x8x48xf32>
    tpu.vector_store %arg15[%84, %c0_43, %c0_44], %87 {strides = array<i32>} : memref<1x8x48xf32, #tpu.memory_space<vmem>>, vector<1x8x48xf32>,
    %88 = arith.index_cast %c0_i32 : i32 to index
    %c0_45 = arith.constant 0 : index
    %c0_46 = arith.constant 0 : index
    %89 = vector.load %arg16[%88, %c0_45, %c0_46] : memref<1x8x32xf32, #tpu.memory_space<vmem>>, vector<1x8x32xf32>
    %90 = vector.shape_cast %89 : vector<1x8x32xf32> to vector<8x32xf32>
    %91 = vector.shape_cast %39 : vector<8x32xf32> to vector<1x8x32xf32>
    tpu.vector_store %arg16[%88, %c0_45, %c0_46], %91 {strides = array<i32>} : memref<1x8x32xf32, #tpu.memory_space<vmem>>, vector<1x8x32xf32>,
    %c1_i32 = arith.constant 1 : i32
    %c0_47 = arith.constant 0 : index
    %c0_48 = arith.constant 0 : index
    %92 = vector.load %arg17[%c0_47, %c0_48] : memref<8x32xf32, #tpu.memory_space<vmem>>, vector<8x32xf32>
    tpu.vector_store %arg17[%c0_47, %c0_48], %70 {strides = array<i32>} : memref<8x32xf32, #tpu.memory_space<vmem>>, vector<8x32xf32>,
    %c0_49 = arith.constant 0 : index
    %c0_50 = arith.constant 0 : index
    %93 = vector.load %arg18[%c0_49, %c0_50] : memref<8x32xf32, #tpu.memory_space<vmem>>, vector<8x32xf32>
    tpu.vector_store %arg18[%c0_49, %c0_50], %68 {strides = array<i32>} : memref<8x32xf32, #tpu.memory_space<vmem>>, vector<8x32xf32>,
    return
  }
}

</mosaic_0001>

<llo_original>
// kernel: attn_decoder_forward.1
$region0: #{attn_decoder_forward.1}
  #allocation0 [shape = 'u32[]', space=smem, size = 0x4, offset = 0x4, fixed_abs, tag = 'smem constant byte address 0x4 - core index']
  #allocation1 [shape = 'u32[144,128]{1,0:T(1,128)}', space=vmem, size = 0x12000, scoped, tag = 'internal scratch']
  %s0 = inlined_call_operand.vmem [shape: bf16[1,8,18], index: 0, kind: input, shape index: {}]
  %s1 = inlined_call_operand.vmem [shape: f32[8,32], index: 1, kind: input, shape index: {}]
  %s2 = inlined_call_operand.vmem [shape: f32[8,32], index: 2, kind: input, shape index: {}]
  %s3 = inlined_call_operand.vmem [shape: bf16[8,32,32], index: 3, kind: input, shape index: {}]
  %s4 = inlined_call_operand.vmem [shape: bf16[18,32], index: 4, kind: input, shape index: {}]
  %s5 = inlined_call_operand.vmem [shape: bf16[32,32], index: 5, kind: input, shape index: {}]
  %s6 = inlined_call_operand.vmem [shape: bf16[18,32], index: 6, kind: input, shape index: {}]
  %s7 = inlined_call_operand.vmem [shape: bf16[32,32], index: 7, kind: input, shape index: {}]
  %s8 = inlined_call_operand.vmem [shape: bf16[32,128], index: 8, kind: input, shape index: {}]
  %s9 = inlined_call_operand.vmem [shape: bf16[32,128], index: 9, kind: input, shape index: {}]
  %s10 = inlined_call_operand.vmem [shape: bf16[32,48], index: 10, kind: input, shape index: {}]
  %s11 = inlined_call_operand.vmem [shape: f32[1,32], index: 11, kind: input, shape index: {}]
  %s12 = inlined_call_operand.vmem [shape: f32[1,32], index: 12, kind: input, shape index: {}]
  %s13 = inlined_call_operand.vmem [shape: f32[1,128], index: 13, kind: input, shape index: {}]
  %s14 = inlined_call_operand.vmem [shape: f32[1,48], index: 14, kind: input, shape index: {}]
  %s15 = inlined_call_operand.hbm [shape: f32[1,8,48], index: 15, kind: output, shape index: {0}]
  %s16 = inlined_call_operand.hbm [shape: f32[1,8,32], index: 16, kind: output, shape index: {1}]
  %s17 = inlined_call_operand.hbm [shape: f32[8,32], index: 17, kind: output, shape index: {2}]
  %s18 = inlined_call_operand.hbm [shape: f32[8,32], index: 18, kind: output, shape index: {3}]
  %19 = xla_tuple %s15, %s16, %s17, %s18
  %s20 = sld [smem:[#allocation0]]
  $region94: #{attn_decoder_forward.1} parent=0
    _
  %s22 = ssub.s32 1, %s20
  %s23 = scalar_select 0, %s22, %s20
  $region1: #{attn_decoder_forward.1} parent=0
    #allocation2 [shape = 'u8[4096]{0}', space=vmem, size = 0x1000, scoped, tag = 'output window, operand 0, single buffered']
    #allocation3 [shape = 's32[1]{0}', space=sflag, size = 0x4, scoped, tag = 'scoped memory for attn_decoder_forward.1']
    #allocation4 [shape = 'u8[4096]{0}', space=vmem, size = 0x1000, scoped, tag = 'output window, operand 1, single buffered']
    #allocation5 [shape = 's32[1]{0}', space=sflag, size = 0x4, scoped, tag = 'scoped memory for attn_decoder_forward.1']
    #allocation6 [shape = 'u8[4096]{0}', space=vmem, size = 0x1000, scoped, tag = 'output window, operand 2, single buffered']
    #allocation7 [shape = 'u8[4096]{0}', space=vmem, size = 0x1000, scoped, tag = 'output window, operand 3, single buffered']
    #allocation8 [shape = 's32[1]{0}', space=sflag, size = 0x4, scoped, tag = 'scoped memory for attn_decoder_forward.1']
    %24 = vsyncpa [#allocation3], 0
    %25 = vsyncpa [#allocation5], 0
    %26 = vsyncpa [#allocation8], 0
    // Predicated region
    $region2: #{attn_decoder_forward.1} parent=1 // pred_check
      _
    $region3: #{attn_decoder_forward.1} parent=1 // pred_check_branch
      %28 = sbr.rel (0) target = $region5
    $region4: #{attn_decoder_forward.1} parent=1 // pred_region
      _
    $region5: #{attn_decoder_forward.1} parent=1 // pred_fallthru
      _
    // Predicated region
    $region6: #{attn_decoder_forward.1} parent=1 // pred_check
      _
    $region7: #{attn_decoder_forward.1} parent=1 // pred_check_branch
      %30 = sbr.rel (0) target = $region9
    $region8: #{attn_decoder_forward.1} parent=1 // pred_region
      _
    $region9: #{attn_decoder_forward.1} parent=1 // pred_fallthru
      _
    // Predicated region
    $region10: #{attn_decoder_forward.1} parent=1 // pred_check
      _
    $region11: #{attn_decoder_forward.1} parent=1 // pred_check_branch
      %32 = sbr.rel (0) target = $region13
    $region12: #{attn_decoder_forward.1} parent=1 // pred_region
      _
    $region13: #{attn_decoder_forward.1} parent=1 // pred_fallthru
      _
    // Predicated region
    $region14: #{attn_decoder_forward.1} parent=1 // pred_check
      _
    $region15: #{attn_decoder_forward.1} parent=1 // pred_check_branch
      %34 = sbr.rel (0) target = $region17
    $region16: #{attn_decoder_forward.1} parent=1 // pred_region
      _
    $region17: #{attn_decoder_forward.1} parent=1 // pred_fallthru
      _
    // Predicated region
    $region18: #{attn_decoder_forward.1} parent=1 // pred_check
      _
    $region19: #{attn_decoder_forward.1} parent=1 // pred_check_branch
      %36 = sbr.rel (0) target = $region21
    $region20: #{attn_decoder_forward.1} parent=1 // pred_region
      _
    $region21: #{attn_decoder_forward.1} parent=1 // pred_fallthru
      _
    // Predicated region
    $region22: #{attn_decoder_forward.1} parent=1 // pred_check
      _
    $region23: #{attn_decoder_forward.1} parent=1 // pred_check_branch
      %38 = sbr.rel (0) target = $region25
    $region24: #{attn_decoder_forward.1} parent=1 // pred_region
      _
    $region25: #{attn_decoder_forward.1} parent=1 // pred_fallthru
      _
    // Predicated region
    $region26: #{attn_decoder_forward.1} parent=1 // pred_check
      _
    $region27: #{attn_decoder_forward.1} parent=1 // pred_check_branch
      %40 = sbr.rel (0) target = $region29
    $region28: #{attn_decoder_forward.1} parent=1 // pred_region
      _
    $region29: #{attn_decoder_forward.1} parent=1 // pred_fallthru
      _
    // Predicated region
    $region30: #{attn_decoder_forward.1} parent=1 // pred_check
      _
    $region31: #{attn_decoder_forward.1} parent=1 // pred_check_branch
      %42 = sbr.rel (0) target = $region33
    $region32: #{attn_decoder_forward.1} parent=1 // pred_region
      _
    $region33: #{attn_decoder_forward.1} parent=1 // pred_fallthru
      _
    // Predicated region
    $region34: #{attn_decoder_forward.1} parent=1 // pred_check
      _
    $region35: #{attn_decoder_forward.1} parent=1 // pred_check_branch
      %44 = sbr.rel (0) target = $region37
    $region36: #{attn_decoder_forward.1} parent=1 // pred_region
      _
    $region37: #{attn_decoder_forward.1} parent=1 // pred_fallthru
      _
    // Predicated region
    $region38: #{attn_decoder_forward.1} parent=1 // pred_check
      _
    $region39: #{attn_decoder_forward.1} parent=1 // pred_check_branch
      %46 = sbr.rel (0) target = $region41
    $region40: #{attn_decoder_forward.1} parent=1 // pred_region
      _
    $region41: #{attn_decoder_forward.1} parent=1 // pred_fallthru
      _
    // Predicated region
    $region42: #{attn_decoder_forward.1} parent=1 // pred_check
      _
    $region43: #{attn_decoder_forward.1} parent=1 // pred_check_branch
      %48 = sbr.rel (0) target = $region45
    $region44: #{attn_decoder_forward.1} parent=1 // pred_region
      _
    $region45: #{attn_decoder_forward.1} parent=1 // pred_fallthru
      _
    // Predicated region
    $region46: #{attn_decoder_forward.1} parent=1 // pred_check
      _
    $region47: #{attn_decoder_forward.1} parent=1 // pred_check_branch
      %50 = sbr.rel (0) target = $region49
    $region48: #{attn_decoder_forward.1} parent=1 // pred_region
      _
    $region49: #{attn_decoder_forward.1} parent=1 // pred_fallthru
      _
    // Predicated region
    $region50: #{attn_decoder_forward.1} parent=1 // pred_check
      _
    $region51: #{attn_decoder_forward.1} parent=1 // pred_check_branch
      %52 = sbr.rel (0) target = $region53
    $region52: #{attn_decoder_forward.1} parent=1 // pred_region
      _
    $region53: #{attn_decoder_forward.1} parent=1 // pred_fallthru
      _
    // Predicated region
    $region54: #{attn_decoder_forward.1} parent=1 // pred_check
      _
    $region55: #{attn_decoder_forward.1} parent=1 // pred_check_branch
      %54 = sbr.rel (0) target = $region57
    $region56: #{attn_decoder_forward.1} parent=1 // pred_region
      _
    $region57: #{attn_decoder_forward.1} parent=1 // pred_fallthru
      _
    // Predicated region
    $region58: #{attn_decoder_forward.1} parent=1 // pred_check
      _
    $region59: #{attn_decoder_forward.1} parent=1 // pred_check_branch
      %56 = sbr.rel (0) target = $region61
    $region60: #{attn_decoder_forward.1} parent=1 // pred_region
      _
    $region61: #{attn_decoder_forward.1} parent=1 // pred_fallthru
      _
    %v58 = vld [vmem:[%s4] sm:$0xf]
    %v59 = vld [vmem:[%s4 + $0x4] sm:$0xf]
    %v60 = vld [vmem:[%s4 + $0x8] sm:$0x1]
    %v61 = vld [vmem:[%s5] sm:$0xf]
    %v62 = vld [vmem:[%s5 + $0x4] sm:$0xf]
    %v63 = vld [vmem:[%s5 + $0x8] sm:$0xf]
    %v64 = vld [vmem:[%s5 + $0xc] sm:$0xf]
    %v65 = vld [vmem:[%s6] sm:$0xf]
    %v66 = vld [vmem:[%s6 + $0x4] sm:$0xf]
    %v67 = vld [vmem:[%s6 + $0x8] sm:$0x1]
    %v68 = vld [vmem:[%s7] sm:$0xf]
    %v69 = vld [vmem:[%s7 + $0x4] sm:$0xf]
    %v70 = vld [vmem:[%s7 + $0x8] sm:$0xf]
    %v71 = vld [vmem:[%s7 + $0xc] sm:$0xf]
    %v72 = vld [vmem:[%s8] sm:$0xf]
    %v73 = vld [vmem:[%s8 + $0x4] sm:$0xf]
    %v74 = vld [vmem:[%s8 + $0x8] sm:$0xf]
    %v75 = vld [vmem:[%s8 + $0xc] sm:$0xf]
    %v76 = vld [vmem:[%s9] sm:$0xf]
    %v77 = vld [vmem:[%s9 + $0x4] sm:$0xf]
    %v78 = vld [vmem:[%s9 + $0x8] sm:$0xf]
    %v79 = vld [vmem:[%s9 + $0xc] sm:$0xf]
    %v80 = vld [vmem:[%s10] sm:$0xf]
    %v81 = vld [vmem:[%s10 + $0x4] sm:$0xf]
    %v82 = vld [vmem:[%s10 + $0x8] sm:$0xf]
    %v83 = vld [vmem:[%s10 + $0xc] sm:$0xf]
    %v84 = vld [vmem:[%s3] sm:$0xf]
    %v85 = vld [vmem:[%s3 + $0x4] sm:$0xf]
    %v86 = vld [vmem:[%s3 + $0x8] sm:$0xf]
    %v87 = vld [vmem:[%s3 + $0xc] sm:$0xf]
    %v88 = vld [vmem:[%s3 + $0x10] sm:$0xf]
    %v89 = vld [vmem:[%s3 + $0x14] sm:$0xf]
    %v90 = vld [vmem:[%s3 + $0x18] sm:$0xf]
    %v91 = vld [vmem:[%s3 + $0x1c] sm:$0xf]
    %v92 = vld [vmem:[%s3 + $0x20] sm:$0xf]
    %v93 = vld [vmem:[%s3 + $0x24] sm:$0xf]
    %v94 = vld [vmem:[%s3 + $0x28] sm:$0xf]
    %v95 = vld [vmem:[%s3 + $0x2c] sm:$0xf]
    %v96 = vld [vmem:[%s3 + $0x30] sm:$0xf]
    %v97 = vld [vmem:[%s3 + $0x34] sm:$0xf]
    %v98 = vld [vmem:[%s3 + $0x38] sm:$0xf]
    %v99 = vld [vmem:[%s3 + $0x3c] sm:$0xf]
    %v100 = vld [vmem:[%s3 + $0x40] sm:$0xf]
    %v101 = vld [vmem:[%s3 + $0x44] sm:$0xf]
    %v102 = vld [vmem:[%s3 + $0x48] sm:$0xf]
    %v103 = vld [vmem:[%s3 + $0x4c] sm:$0xf]
    %v104 = vld [vmem:[%s3 + $0x50] sm:$0xf]
    %v105 = vld [vmem:[%s3 + $0x54] sm:$0xf]
    %v106 = vld [vmem:[%s3 + $0x58] sm:$0xf]
    %v107 = vld [vmem:[%s3 + $0x5c] sm:$0xf]
    %v108 = vld [vmem:[%s3 + $0x60] sm:$0xf]
    %v109 = vld [vmem:[%s3 + $0x64] sm:$0xf]
    %v110 = vld [vmem:[%s3 + $0x68] sm:$0xf]
    %v111 = vld [vmem:[%s3 + $0x6c] sm:$0xf]
    %v112 = vld [vmem:[%s3 + $0x70] sm:$0xf]
    %v113 = vld [vmem:[%s3 + $0x74] sm:$0xf]
    %v114 = vld [vmem:[%s3 + $0x78] sm:$0xf]
    %v115 = vld [vmem:[%s3 + $0x7c] sm:$0xf]
    %v116 = vld [vmem:[%s11] sm:$0x1]
    %v118 = vlaneseq
    %v119 = vshrl.u32 %v118, 7
    %v120 = vsub.s32 0, %v119
    %v121 = vrot.slane %v116, %v120
    %v123 = vld [vmem:[%s12] sm:$0x1]
    %v125 = vlaneseq
    %v126 = vshrl.u32 %v125, 7
    %v127 = vsub.s32 0, %v126
    %v128 = vrot.slane %v123, %v127
    %v130 = vld [vmem:[%s13] sm:$0x1]
    %v132 = vlaneseq
    %v133 = vshrl.u32 %v132, 7
    %v134 = vsub.s32 0, %v133
    %v135 = vrot.slane %v130, %v134
    %v137 = vld [vmem:[%s14] sm:$0x1]
    %v139 = vlaneseq
    %v140 = vshrl.u32 %v139, 7
    %v141 = vsub.s32 0, %v140
    %v142 = vrot.slane %v137, %v141
    %v144 = vld [vmem:[%s1] sm:$0xff]
    %v145 = vld [vmem:[%s2] sm:$0xff]
    %v146 = vld [vmem:[%s0] sm:$0xf]
    %v147 = vpack.c.bf16 %v144, %v144
    %v152 = vunpack.c.l.b16 %v61
    %v153 = vunpack.c.l.b16 %v62
    %v154 = vunpack.c.l.b16 %v63
    %v155 = vunpack.c.l.b16 %v64
    %v156 = vpack.c.b16 %v153, %v152
    %v157 = vpack.c.b16 %v155, %v154
    %vm160 = vcmask 261120
    %v162 = vsel %vm160, %v147, 0
    %164 = vmatprep.subr.bf16.mxu0 0
    %165 = vmatpush1.bf16.msra.mxu0 0
    %166 = vmatprep.subr.bf16.mxu0 0
    %167 = vmatpush1.bf16.msra.mxu0 0
    %168 = vmatprep.subr.bf16.mxu0 0
    %169 = vmatpush1.bf16.msra.mxu0 0
    %170 = vmatprep.subr.bf16.mxu0 0
    %171 = vmatpush1.bf16.msra.mxu0 0
    %172 = vmatprep.subr.bf16.mxu0 0
    %173 = vmatpush1.bf16.msra.mxu0 0
    %174 = vmatprep.subr.bf16.mxu0 0
    %175 = vmatpush1.bf16.msra.mxu0 0
    %176 = vmatprep.subr.bf16.mxu0 0
    %177 = vmatpush1.bf16.msra.mxu0 %v157
    %178 = vmatprep.subr.bf16.mxu0 0
    %179 = vmatpush1.bf16.msra.mxu0 %v156
    %180 = vmatprep.subr.bf16.mxu0 0
    %181 = vmatpush2.bf16.msra.mxu0 0
    %182 = vmatprep.subr.bf16.mxu0 0
    %183 = vmatpush2.bf16.msra.mxu0 0
    %184 = vmatprep.subr.bf16.mxu0 0
    %185 = vmatpush2.bf16.msra.mxu0 0
    %186 = vmatprep.subr.bf16.mxu0 0
    %187 = vmatpush2.bf16.msra.mxu0 0
    %188 = vmatprep.subr.bf16.mxu0 0
    %189 = vmatpush2.bf16.msra.mxu0 0
    %190 = vmatprep.subr.bf16.mxu0 0
    %191 = vmatpush2.bf16.msra.mxu0 0
    %192 = vmatprep.subr.bf16.mxu0 0
    %193 = vmatpush2.bf16.msra.mxu0 0
    %194 = vmatprep.subr.bf16.mxu0 0
    %195 = vmatpush2.bf16.msra.mxu0 0
    %196 = vmatprep.mubr.bf16.mxu0 0
    %197 = vmatmul.mubr.bf16.gmra.mxu0 %v162
    %v198 = vpop.f32.mrf.mxu0
    %v199 = vadd.f32 0.0, %v198
    %v200 = vpop.f32.mrf.mxu0
    %v201 = vpop.f32.mrf.mxu0
    %v202 = vpop.f32.mrf.mxu0
    %203 = vdwg.mxu0
    %v207 = vunpack.c.l.b16 %v58
    %v208 = vunpack.c.l.b16 %v59
    %v209 = vunpack.c.l.b16 %v60
    %v210 = vpack.c.b16 %v208, %v207
    %v211 = vpack.c.b16 %v209, %v209
    %vm213 = vcmask 146432
    %v215 = vsel %vm213, %v146, 0
    %vm217 = vcmask 1040384
    %v219 = vsel %vm217, %v211, 0
    %221 = vmatprep.subr.bf16.mxu0 0
    %222 = vmatpush1.bf16.msra.mxu0 0
    %223 = vmatprep.subr.bf16.mxu0 0
    %224 = vmatpush1.bf16.msra.mxu0 0
    %225 = vmatprep.subr.bf16.mxu0 0
    %226 = vmatpush1.bf16.msra.mxu0 0
    %227 = vmatprep.subr.bf16.mxu0 0
    %228 = vmatpush1.bf16.msra.mxu0 0
    %229 = vmatprep.subr.bf16.mxu0 0
    %230 = vmatpush1.bf16.msra.mxu0 0
    %231 = vmatprep.subr.bf16.mxu0 0
    %232 = vmatpush1.bf16.msra.mxu0 0
    %233 = vmatprep.subr.bf16.mxu0 0
    %234 = vmatpush1.bf16.msra.mxu0 %v219
    %235 = vmatprep.subr.bf16.mxu0 0
    %236 = vmatpush1.bf16.msra.mxu0 %v210
    %237 = vmatprep.subr.bf16.mxu0 0
    %238 = vmatpush2.bf16.msra.mxu0 0
    %239 = vmatprep.subr.bf16.mxu0 0
    %240 = vmatpush2.bf16.msra.mxu0 0
    %241 = vmatprep.subr.bf16.mxu0 0
    %242 = vmatpush2.bf16.msra.mxu0 0
    %243 = vmatprep.subr.bf16.mxu0 0
    %244 = vmatpush2.bf16.msra.mxu0 0
    %245 = vmatprep.subr.bf16.mxu0 0
    %246 = vmatpush2.bf16.msra.mxu0 0
    %247 = vmatprep.subr.bf16.mxu0 0
    %248 = vmatpush2.bf16.msra.mxu0 0
    %249 = vmatprep.subr.bf16.mxu0 0
    %250 = vmatpush2.bf16.msra.mxu0 0
    %251 = vmatprep.subr.bf16.mxu0 0
    %252 = vmatpush2.bf16.msra.mxu0 0
    %253 = vmatprep.mubr.bf16.mxu0 0
    %254 = vmatmul.mubr.bf16.gmra.mxu0 %v215
    %v255 = vpop.f32.mrf.mxu0
    %v256 = vadd.f32 %v199, %v255
    %v257 = vpop.f32.mrf.mxu0
    %v258 = vpop.f32.mrf.mxu0
    %v259 = vpop.f32.mrf.mxu0
    %260 = vdwg.mxu0
    %v261 = vadd.f32 %v256, %v121
    %v262 = vsel %vm160, %v261, -inf
    %263 = vmax.xlane.f32.xlu0 %v262
    %v264 = vpop.xlane.xlu0 %263
    %v265 = vsub.f32 %v261, %v264
    %v266 = vmul.f32 %v265, 1.442695
    %v267 = vpow.pop %v266
    %v268 = vsel %vm160, %v267, 0.0
    %269 = vadd.xlane.f32.xlu0 %v268
    %v270 = vpop.xlane.xlu0 %269
    %v271 = vrcp.pop %v270
    %v272 = vmul.f32 %v267, %v271
    %v274 = vcombine.high %v272, %v272
    %v276 = vunpack.c.l.s4 1966171168
    %v277 = vunpack.c.0.s8 %v276
    %v278 = vlaneseq
    %v279 = vshrl.u32 %v278, 7
    %v280 = vsub.s32 %v277, %v279
    %v281 = vrot.slane %v272, %v280
    %v283 = vunpack.c.l.s4 1966171168
    %v284 = vunpack.c.0.s8 %v283
    %v285 = vlaneseq
    %v286 = vshrl.u32 %v285, 7
    %v287 = vsub.s32 %v284, %v286
    %v288 = vrot.slane %v274, %v287
    %v289 = vcombine.high %v281, %v281
    %v290 = vcombine.high %v288, %v288
    %v292 = vunpack.c.l.s4 1966171168
    %v293 = vunpack.c.0.s8 %v292
    %v294 = vlaneseq
    %v295 = vshrl.u32 %v294, 7
    %v296 = vsub.s32 %v293, %v295
    %v297 = vrot.slane %v281, %v296
    %v299 = vunpack.c.l.s4 1966171168
    %v300 = vunpack.c.0.s8 %v299
    %v301 = vlaneseq
    %v302 = vshrl.u32 %v301, 7
    %v303 = vsub.s32 %v300, %v302
    %v304 = vrot.slane %v288, %v303
    %v306 = vunpack.c.l.s4 1966171168
    %v307 = vunpack.c.0.s8 %v306
    %v308 = vlaneseq
    %v309 = vshrl.u32 %v308, 7
    %v310 = vsub.s32 %v307, %v309
    %v311 = vrot.slane %v289, %v310
    %v313 = vunpack.c.l.s4 1966171168
    %v314 = vunpack.c.0.s8 %v313
    %v315 = vlaneseq
    %v316 = vshrl.u32 %v315, 7
    %v317 = vsub.s32 %v314, %v316
    %v318 = vrot.slane %v290, %v317
    %v319 = vcombine.high %v297, %v297
    %v320 = vcombine.high %v304, %v304
    %v321 = vcombine.high %v311, %v311
    %v322 = vcombine.high %v318, %v318
    %v331 = vpack.c.bf16 %v297, %v297
    %v332 = vpack.c.bf16 %v311, %v311
    %v333 = vpack.c.bf16 %v319, %v319
    %v334 = vpack.c.bf16 %v321, %v321
    %v335 = vpack.c.bf16 %v304, %v304
    %v336 = vpack.c.bf16 %v318, %v318
    %v337 = vpack.c.bf16 %v320, %v320
    %v338 = vpack.c.bf16 %v322, %v322
    %v343 = vunpack.c.l.b16 %v84
    %v344 = vunpack.c.l.b16 %v85
    %v345 = vunpack.c.l.b16 %v86
    %v346 = vunpack.c.l.b16 %v87
    %v347 = vpack.c.b16 %v344, %v343
    %v348 = vpack.c.b16 %v346, %v345
    %v352 = vsel %vm160, %v331, 0
    %354 = vmatprep.subr.bf16.mxu0 0
    %355 = vmatpush1.bf16.msra.mxu0 0
    %356 = vmatprep.subr.bf16.mxu0 0
    %357 = vmatpush1.bf16.msra.mxu0 0
    %358 = vmatprep.subr.bf16.mxu0 0
    %359 = vmatpush1.bf16.msra.mxu0 0
    %360 = vmatprep.subr.bf16.mxu0 0
    %361 = vmatpush1.bf16.msra.mxu0 0
    %362 = vmatprep.subr.bf16.mxu0 0
    %363 = vmatpush1.bf16.msra.mxu0 0
    %364 = vmatprep.subr.bf16.mxu0 0
    %365 = vmatpush1.bf16.msra.mxu0 0
    %366 = vmatprep.subr.bf16.mxu0 0
    %367 = vmatpush1.bf16.msra.mxu0 %v348
    %368 = vmatprep.subr.bf16.mxu0 0
    %369 = vmatpush1.bf16.msra.mxu0 %v347
    %370 = vmatprep.subr.bf16.mxu0 0
    %371 = vmatpush2.bf16.msra.mxu0 0
    %372 = vmatprep.subr.bf16.mxu0 0
    %373 = vmatpush2.bf16.msra.mxu0 0
    %374 = vmatprep.subr.bf16.mxu0 0
    %375 = vmatpush2.bf16.msra.mxu0 0
    %376 = vmatprep.subr.bf16.mxu0 0
    %377 = vmatpush2.bf16.msra.mxu0 0
    %378 = vmatprep.subr.bf16.mxu0 0
    %379 = vmatpush2.bf16.msra.mxu0 0
    %380 = vmatprep.subr.bf16.mxu0 0
    %381 = vmatpush2.bf16.msra.mxu0 0
    %382 = vmatprep.subr.bf16.mxu0 0
    %383 = vmatpush2.bf16.msra.mxu0 0
    %384 = vmatprep.subr.bf16.mxu0 0
    %385 = vmatpush2.bf16.msra.mxu0 0
    %386 = vmatprep.mubr.bf16.mxu0 0
    %387 = vmatmul.mubr.bf16.gmra.mxu0 %v352
    %v388 = vpop.f32.mrf.mxu0
    %v389 = vadd.f32 0.0, %v388
    %v390 = vpop.f32.mrf.mxu0
    %v391 = vpop.f32.mrf.mxu0
    %v392 = vpop.f32.mrf.mxu0
    %393 = vdwg.mxu0
    %v398 = vunpack.c.l.b16 %v88
    %v399 = vunpack.c.l.b16 %v89
    %v400 = vunpack.c.l.b16 %v90
    %v401 = vunpack.c.l.b16 %v91
    %v402 = vpack.c.b16 %v399, %v398
    %v403 = vpack.c.b16 %v401, %v400
    %v407 = vsel %vm160, %v332, 0
    %409 = vmatprep.subr.bf16.mxu0 0
    %410 = vmatpush1.bf16.msra.mxu0 0
    %411 = vmatprep.subr.bf16.mxu0 0
    %412 = vmatpush1.bf16.msra.mxu0 0
    %413 = vmatprep.subr.bf16.mxu0 0
    %414 = vmatpush1.bf16.msra.mxu0 0
    %415 = vmatprep.subr.bf16.mxu0 0
    %416 = vmatpush1.bf16.msra.mxu0 0
    %417 = vmatprep.subr.bf16.mxu0 0
    %418 = vmatpush1.bf16.msra.mxu0 0
    %419 = vmatprep.subr.bf16.mxu0 0
    %420 = vmatpush1.bf16.msra.mxu0 0
    %421 = vmatprep.subr.bf16.mxu0 0
    %422 = vmatpush1.bf16.msra.mxu0 %v403
    %423 = vmatprep.subr.bf16.mxu0 0
    %424 = vmatpush1.bf16.msra.mxu0 %v402
    %425 = vmatprep.subr.bf16.mxu0 0
    %426 = vmatpush2.bf16.msra.mxu0 0
    %427 = vmatprep.subr.bf16.mxu0 0
    %428 = vmatpush2.bf16.msra.mxu0 0
    %429 = vmatprep.subr.bf16.mxu0 0
    %430 = vmatpush2.bf16.msra.mxu0 0
    %431 = vmatprep.subr.bf16.mxu0 0
    %432 = vmatpush2.bf16.msra.mxu0 0
    %433 = vmatprep.subr.bf16.mxu0 0
    %434 = vmatpush2.bf16.msra.mxu0 0
    %435 = vmatprep.subr.bf16.mxu0 0
    %436 = vmatpush2.bf16.msra.mxu0 0
    %437 = vmatprep.subr.bf16.mxu0 0
    %438 = vmatpush2.bf16.msra.mxu0 0
    %439 = vmatprep.subr.bf16.mxu0 0
    %440 = vmatpush2.bf16.msra.mxu0 0
    %441 = vmatprep.mubr.bf16.mxu0 0
    %442 = vmatmul.mubr.bf16.gmra.mxu0 %v407
    %v443 = vpop.f32.mrf.mxu0
    %v444 = vadd.f32 0.0, %v443
    %v445 = vpop.f32.mrf.mxu0
    %v446 = vpop.f32.mrf.mxu0
    %v447 = vpop.f32.mrf.mxu0
    %448 = vdwg.mxu0
    %v453 = vunpack.c.l.b16 %v92
    %v454 = vunpack.c.l.b16 %v93
    %v455 = vunpack.c.l.b16 %v94
    %v456 = vunpack.c.l.b16 %v95
    %v457 = vpack.c.b16 %v454, %v453
    %v458 = vpack.c.b16 %v456, %v455
    %v462 = vsel %vm160, %v333, 0
    %464 = vmatprep.subr.bf16.mxu0 0
    %465 = vmatpush1.bf16.msra.mxu0 0
    %466 = vmatprep.subr.bf16.mxu0 0
    %467 = vmatpush1.bf16.msra.mxu0 0
    %468 = vmatprep.subr.bf16.mxu0 0
    %469 = vmatpush1.bf16.msra.mxu0 0
    %470 = vmatprep.subr.bf16.mxu0 0
    %471 = vmatpush1.bf16.msra.mxu0 0
    %472 = vmatprep.subr.bf16.mxu0 0
    %473 = vmatpush1.bf16.msra.mxu0 0
    %474 = vmatprep.subr.bf16.mxu0 0
    %475 = vmatpush1.bf16.msra.mxu0 0
    %476 = vmatprep.subr.bf16.mxu0 0
    %477 = vmatpush1.bf16.msra.mxu0 %v458
    %478 = vmatprep.subr.bf16.mxu0 0
    %479 = vmatpush1.bf16.msra.mxu0 %v457
    %480 = vmatprep.subr.bf16.mxu0 0
    %481 = vmatpush2.bf16.msra.mxu0 0
    %482 = vmatprep.subr.bf16.mxu0 0
    %483 = vmatpush2.bf16.msra.mxu0 0
    %484 = vmatprep.subr.bf16.mxu0 0
    %485 = vmatpush2.bf16.msra.mxu0 0
    %486 = vmatprep.subr.bf16.mxu0 0
    %487 = vmatpush2.bf16.msra.mxu0 0
    %488 = vmatprep.subr.bf16.mxu0 0
    %489 = vmatpush2.bf16.msra.mxu0 0
    %490 = vmatprep.subr.bf16.mxu0 0
    %491 = vmatpush2.bf16.msra.mxu0 0
    %492 = vmatprep.subr.bf16.mxu0 0
    %493 = vmatpush2.bf16.msra.mxu0 0
    %494 = vmatprep.subr.bf16.mxu0 0
    %495 = vmatpush2.bf16.msra.mxu0 0
    %496 = vmatprep.mubr.bf16.mxu0 0
    %497 = vmatmul.mubr.bf16.gmra.mxu0 %v462
    %v498 = vpop.f32.mrf.mxu0
    %v499 = vadd.f32 0.0, %v498
    %v500 = vpop.f32.mrf.mxu0
    %v501 = vpop.f32.mrf.mxu0
    %v502 = vpop.f32.mrf.mxu0
    %503 = vdwg.mxu0
    %v508 = vunpack.c.l.b16 %v96
    %v509 = vunpack.c.l.b16 %v97
    %v510 = vunpack.c.l.b16 %v98
    %v511 = vunpack.c.l.b16 %v99
    %v512 = vpack.c.b16 %v509, %v508
    %v513 = vpack.c.b16 %v511, %v510
    %v517 = vsel %vm160, %v334, 0
    %519 = vmatprep.subr.bf16.mxu0 0
    %520 = vmatpush1.bf16.msra.mxu0 0
    %521 = vmatprep.subr.bf16.mxu0 0
    %522 = vmatpush1.bf16.msra.mxu0 0
    %523 = vmatprep.subr.bf16.mxu0 0
    %524 = vmatpush1.bf16.msra.mxu0 0
    %525 = vmatprep.subr.bf16.mxu0 0
    %526 = vmatpush1.bf16.msra.mxu0 0
    %527 = vmatprep.subr.bf16.mxu0 0
    %528 = vmatpush1.bf16.msra.mxu0 0
    %529 = vmatprep.subr.bf16.mxu0 0
    %530 = vmatpush1.bf16.msra.mxu0 0
    %531 = vmatprep.subr.bf16.mxu0 0
    %532 = vmatpush1.bf16.msra.mxu0 %v513
    %533 = vmatprep.subr.bf16.mxu0 0
    %534 = vmatpush1.bf16.msra.mxu0 %v512
    %535 = vmatprep.subr.bf16.mxu0 0
    %536 = vmatpush2.bf16.msra.mxu0 0
    %537 = vmatprep.subr.bf16.mxu0 0
    %538 = vmatpush2.bf16.msra.mxu0 0
    %539 = vmatprep.subr.bf16.mxu0 0
    %540 = vmatpush2.bf16.msra.mxu0 0
    %541 = vmatprep.subr.bf16.mxu0 0
    %542 = vmatpush2.bf16.msra.mxu0 0
    %543 = vmatprep.subr.bf16.mxu0 0
    %544 = vmatpush2.bf16.msra.mxu0 0
    %545 = vmatprep.subr.bf16.mxu0 0
    %546 = vmatpush2.bf16.msra.mxu0 0
    %547 = vmatprep.subr.bf16.mxu0 0
    %548 = vmatpush2.bf16.msra.mxu0 0
    %549 = vmatprep.subr.bf16.mxu0 0
    %550 = vmatpush2.bf16.msra.mxu0 0
    %551 = vmatprep.mubr.bf16.mxu0 0
    %552 = vmatmul.mubr.bf16.gmra.mxu0 %v517
    %v553 = vpop.f32.mrf.mxu0
    %v554 = vadd.f32 0.0, %v553
    %v555 = vpop.f32.mrf.mxu0
    %v556 = vpop.f32.mrf.mxu0
    %v557 = vpop.f32.mrf.mxu0
    %558 = vdwg.mxu0
    %v563 = vunpack.c.l.b16 %v100
    %v564 = vunpack.c.l.b16 %v101
    %v565 = vunpack.c.l.b16 %v102
    %v566 = vunpack.c.l.b16 %v103
    %v567 = vpack.c.b16 %v564, %v563
    %v568 = vpack.c.b16 %v566, %v565
    %v572 = vsel %vm160, %v335, 0
    %574 = vmatprep.subr.bf16.mxu0 0
    %575 = vmatpush1.bf16.msra.mxu0 0
    %576 = vmatprep.subr.bf16.mxu0 0
    %577 = vmatpush1.bf16.msra.mxu0 0
    %578 = vmatprep.subr.bf16.mxu0 0
    %579 = vmatpush1.bf16.msra.mxu0 0
    %580 = vmatprep.subr.bf16.mxu0 0
    %581 = vmatpush1.bf16.msra.mxu0 0
    %582 = vmatprep.subr.bf16.mxu0 0
    %583 = vmatpush1.bf16.msra.mxu0 0
    %584 = vmatprep.subr.bf16.mxu0 0
    %585 = vmatpush1.bf16.msra.mxu0 0
    %586 = vmatprep.subr.bf16.mxu0 0
    %587 = vmatpush1.bf16.msra.mxu0 %v568
    %588 = vmatprep.subr.bf16.mxu0 0
    %589 = vmatpush1.bf16.msra.mxu0 %v567
    %590 = vmatprep.subr.bf16.mxu0 0
    %591 = vmatpush2.bf16.msra.mxu0 0
    %592 = vmatprep.subr.bf16.mxu0 0
    %593 = vmatpush2.bf16.msra.mxu0 0
    %594 = vmatprep.subr.bf16.mxu0 0
    %595 = vmatpush2.bf16.msra.mxu0 0
    %596 = vmatprep.subr.bf16.mxu0 0
    %597 = vmatpush2.bf16.msra.mxu0 0
    %598 = vmatprep.subr.bf16.mxu0 0
    %599 = vmatpush2.bf16.msra.mxu0 0
    %600 = vmatprep.subr.bf16.mxu0 0
    %601 = vmatpush2.bf16.msra.mxu0 0
    %602 = vmatprep.subr.bf16.mxu0 0
    %603 = vmatpush2.bf16.msra.mxu0 0
    %604 = vmatprep.subr.bf16.mxu0 0
    %605 = vmatpush2.bf16.msra.mxu0 0
    %606 = vmatprep.mubr.bf16.mxu0 0
    %607 = vmatmul.mubr.bf16.gmra.mxu0 %v572
    %v608 = vpop.f32.mrf.mxu0
    %v609 = vadd.f32 0.0, %v608
    %v610 = vpop.f32.mrf.mxu0
    %v611 = vpop.f32.mrf.mxu0
    %v612 = vpop.f32.mrf.mxu0
    %613 = vdwg.mxu0
    %v618 = vunpack.c.l.b16 %v104
    %v619 = vunpack.c.l.b16 %v105
    %v620 = vunpack.c.l.b16 %v106
    %v621 = vunpack.c.l.b16 %v107
    %v622 = vpack.c.b16 %v619, %v618
    %v623 = vpack.c.b16 %v621, %v620
    %v627 = vsel %vm160, %v336, 0
    %629 = vmatprep.subr.bf16.mxu0 0
    %630 = vmatpush1.bf16.msra.mxu0 0
    %631 = vmatprep.subr.bf16.mxu0 0
    %632 = vmatpush1.bf16.msra.mxu0 0
    %633 = vmatprep.subr.bf16.mxu0 0
    %634 = vmatpush1.bf16.msra.mxu0 0
    %635 = vmatprep.subr.bf16.mxu0 0
    %636 = vmatpush1.bf16.msra.mxu0 0
    %637 = vmatprep.subr.bf16.mxu0 0
    %638 = vmatpush1.bf16.msra.mxu0 0
    %639 = vmatprep.subr.bf16.mxu0 0
    %640 = vmatpush1.bf16.msra.mxu0 0
    %641 = vmatprep.subr.bf16.mxu0 0
    %642 = vmatpush1.bf16.msra.mxu0 %v623
    %643 = vmatprep.subr.bf16.mxu0 0
    %644 = vmatpush1.bf16.msra.mxu0 %v622
    %645 = vmatprep.subr.bf16.mxu0 0
    %646 = vmatpush2.bf16.msra.mxu0 0
    %647 = vmatprep.subr.bf16.mxu0 0
    %648 = vmatpush2.bf16.msra.mxu0 0
    %649 = vmatprep.subr.bf16.mxu0 0
    %650 = vmatpush2.bf16.msra.mxu0 0
    %651 = vmatprep.subr.bf16.mxu0 0
    %652 = vmatpush2.bf16.msra.mxu0 0
    %653 = vmatprep.subr.bf16.mxu0 0
    %654 = vmatpush2.bf16.msra.mxu0 0
    %655 = vmatprep.subr.bf16.mxu0 0
    %656 = vmatpush2.bf16.msra.mxu0 0
    %657 = vmatprep.subr.bf16.mxu0 0
    %658 = vmatpush2.bf16.msra.mxu0 0
    %659 = vmatprep.subr.bf16.mxu0 0
    %660 = vmatpush2.bf16.msra.mxu0 0
    %661 = vmatprep.mubr.bf16.mxu0 0
    %662 = vmatmul.mubr.bf16.gmra.mxu0 %v627
    %v663 = vpop.f32.mrf.mxu0
    %v664 = vadd.f32 0.0, %v663
    %v665 = vpop.f32.mrf.mxu0
    %v666 = vpop.f32.mrf.mxu0
    %v667 = vpop.f32.mrf.mxu0
    %668 = vdwg.mxu0
    %v673 = vunpack.c.l.b16 %v108
    %v674 = vunpack.c.l.b16 %v109
    %v675 = vunpack.c.l.b16 %v110
    %v676 = vunpack.c.l.b16 %v111
    %v677 = vpack.c.b16 %v674, %v673
    %v678 = vpack.c.b16 %v676, %v675
    %v682 = vsel %vm160, %v337, 0
    %684 = vmatprep.subr.bf16.mxu0 0
    %685 = vmatpush1.bf16.msra.mxu0 0
    %686 = vmatprep.subr.bf16.mxu0 0
    %687 = vmatpush1.bf16.msra.mxu0 0
    %688 = vmatprep.subr.bf16.mxu0 0
    %689 = vmatpush1.bf16.msra.mxu0 0
    %690 = vmatprep.subr.bf16.mxu0 0
    %691 = vmatpush1.bf16.msra.mxu0 0
    %692 = vmatprep.subr.bf16.mxu0 0
    %693 = vmatpush1.bf16.msra.mxu0 0
    %694 = vmatprep.subr.bf16.mxu0 0
    %695 = vmatpush1.bf16.msra.mxu0 0
    %696 = vmatprep.subr.bf16.mxu0 0
    %697 = vmatpush1.bf16.msra.mxu0 %v678
    %698 = vmatprep.subr.bf16.mxu0 0
    %699 = vmatpush1.bf16.msra.mxu0 %v677
    %700 = vmatprep.subr.bf16.mxu0 0
    %701 = vmatpush2.bf16.msra.mxu0 0
    %702 = vmatprep.subr.bf16.mxu0 0
    %703 = vmatpush2.bf16.msra.mxu0 0
    %704 = vmatprep.subr.bf16.mxu0 0
    %705 = vmatpush2.bf16.msra.mxu0 0
    %706 = vmatprep.subr.bf16.mxu0 0
    %707 = vmatpush2.bf16.msra.mxu0 0
    %708 = vmatprep.subr.bf16.mxu0 0
    %709 = vmatpush2.bf16.msra.mxu0 0
    %710 = vmatprep.subr.bf16.mxu0 0
    %711 = vmatpush2.bf16.msra.mxu0 0
    %712 = vmatprep.subr.bf16.mxu0 0
    %713 = vmatpush2.bf16.msra.mxu0 0
    %714 = vmatprep.subr.bf16.mxu0 0
    %715 = vmatpush2.bf16.msra.mxu0 0
    %716 = vmatprep.mubr.bf16.mxu0 0
    %717 = vmatmul.mubr.bf16.gmra.mxu0 %v682
    %v718 = vpop.f32.mrf.mxu0
    %v719 = vadd.f32 0.0, %v718
    %v720 = vpop.f32.mrf.mxu0
    %v721 = vpop.f32.mrf.mxu0
    %v722 = vpop.f32.mrf.mxu0
    %723 = vdwg.mxu0
    %v728 = vunpack.c.l.b16 %v112
    %v729 = vunpack.c.l.b16 %v113
    %v730 = vunpack.c.l.b16 %v114
    %v731 = vunpack.c.l.b16 %v115
    %v732 = vpack.c.b16 %v729, %v728
    %v733 = vpack.c.b16 %v731, %v730
    %v737 = vsel %vm160, %v338, 0
    %739 = vmatprep.subr.bf16.mxu0 0
    %740 = vmatpush1.bf16.msra.mxu0 0
    %741 = vmatprep.subr.bf16.mxu0 0
    %742 = vmatpush1.bf16.msra.mxu0 0
    %743 = vmatprep.subr.bf16.mxu0 0
    %744 = vmatpush1.bf16.msra.mxu0 0
    %745 = vmatprep.subr.bf16.mxu0 0
    %746 = vmatpush1.bf16.msra.mxu0 0
    %747 = vmatprep.subr.bf16.mxu0 0
    %748 = vmatpush1.bf16.msra.mxu0 0
    %749 = vmatprep.subr.bf16.mxu0 0
    %750 = vmatpush1.bf16.msra.mxu0 0
    %751 = vmatprep.subr.bf16.mxu0 0
    %752 = vmatpush1.bf16.msra.mxu0 %v733
    %753 = vmatprep.subr.bf16.mxu0 0
    %754 = vmatpush1.bf16.msra.mxu0 %v732
    %755 = vmatprep.subr.bf16.mxu0 0
    %756 = vmatpush2.bf16.msra.mxu0 0
    %757 = vmatprep.subr.bf16.mxu0 0
    %758 = vmatpush2.bf16.msra.mxu0 0
    %759 = vmatprep.subr.bf16.mxu0 0
    %760 = vmatpush2.bf16.msra.mxu0 0
    %761 = vmatprep.subr.bf16.mxu0 0
    %762 = vmatpush2.bf16.msra.mxu0 0
    %763 = vmatprep.subr.bf16.mxu0 0
    %764 = vmatpush2.bf16.msra.mxu0 0
    %765 = vmatprep.subr.bf16.mxu0 0
    %766 = vmatpush2.bf16.msra.mxu0 0
    %767 = vmatprep.subr.bf16.mxu0 0
    %768 = vmatpush2.bf16.msra.mxu0 0
    %769 = vmatprep.subr.bf16.mxu0 0
    %770 = vmatpush2.bf16.msra.mxu0 0
    %771 = vmatprep.mubr.bf16.mxu0 0
    %772 = vmatmul.mubr.bf16.gmra.mxu0 %v737
    %v773 = vpop.f32.mrf.mxu0
    %v774 = vadd.f32 0.0, %v773
    %v775 = vpop.f32.mrf.mxu0
    %v776 = vpop.f32.mrf.mxu0
    %v777 = vpop.f32.mrf.mxu0
    %778 = vdwg.mxu0
    %v779 = vpack.c.bf16 %v389, %v389
    %v780 = vpack.c.bf16 %v444, %v444
    %v781 = vpack.c.bf16 %v499, %v499
    %v782 = vpack.c.bf16 %v554, %v554
    %v783 = vpack.c.bf16 %v609, %v609
    %v784 = vpack.c.bf16 %v664, %v664
    %v785 = vpack.c.bf16 %v719, %v719
    %v786 = vpack.c.bf16 %v774, %v774
    %v795 = vunpack.c.l.b16 %v779
    %v796 = vunpack.c.l.b16 %v780
    %v797 = vunpack.c.l.b16 %v781
    %v798 = vunpack.c.l.b16 %v782
    %v799 = vunpack.c.l.b16 %v783
    %v800 = vunpack.c.l.b16 %v784
    %v801 = vunpack.c.l.b16 %v785
    %v802 = vunpack.c.l.b16 %v786
    %v803 = vrot.slane %v796, 7
    %vm804 = vcmask 1041409
    %v805 = vsel %vm804, %v803, %v795
    %v806 = vrot.slane %v797, 6
    %vm807 = vcmask 1042434
    %v808 = vsel %vm807, %v806, %v805
    %v809 = vrot.slane %v798, 5
    %vm810 = vcmask 1043459
    %v811 = vsel %vm810, %v809, %v808
    %v812 = vrot.slane %v799, 4
    %vm813 = vcmask 1044484
    %v814 = vsel %vm813, %v812, %v811
    %v815 = vrot.slane %v800, 3
    %vm816 = vcmask 1045509
    %v817 = vsel %vm816, %v815, %v814
    %v818 = vrot.slane %v801, 2
    %vm819 = vcmask 1046534
    %v820 = vsel %vm819, %v818, %v817
    %v821 = vrot.slane %v802, 1
    %vm822 = vcmask 1047559
    %v823 = vsel %vm822, %v821, %v820
    %v824 = vpack.c.b16 %v823, %v823
    %v829 = vunpack.c.l.b16 %v68
    %v830 = vunpack.c.l.b16 %v69
    %v831 = vunpack.c.l.b16 %v70
    %v832 = vunpack.c.l.b16 %v71
    %v833 = vpack.c.b16 %v830, %v829
    %v834 = vpack.c.b16 %v832, %v831
    %v838 = vsel %vm160, %v824, 0
    %840 = vmatprep.subr.bf16.mxu0 0
    %841 = vmatpush1.bf16.msra.mxu0 0
    %842 = vmatprep.subr.bf16.mxu0 0
    %843 = vmatpush1.bf16.msra.mxu0 0
    %844 = vmatprep.subr.bf16.mxu0 0
    %845 = vmatpush1.bf16.msra.mxu0 0
    %846 = vmatprep.subr.bf16.mxu0 0
    %847 = vmatpush1.bf16.msra.mxu0 0
    %848 = vmatprep.subr.bf16.mxu0 0
    %849 = vmatpush1.bf16.msra.mxu0 0
    %850 = vmatprep.subr.bf16.mxu0 0
    %851 = vmatpush1.bf16.msra.mxu0 0
    %852 = vmatprep.subr.bf16.mxu0 0
    %853 = vmatpush1.bf16.msra.mxu0 %v834
    %854 = vmatprep.subr.bf16.mxu0 0
    %855 = vmatpush1.bf16.msra.mxu0 %v833
    %856 = vmatprep.subr.bf16.mxu0 0
    %857 = vmatpush2.bf16.msra.mxu0 0
    %858 = vmatprep.subr.bf16.mxu0 0
    %859 = vmatpush2.bf16.msra.mxu0 0
    %860 = vmatprep.subr.bf16.mxu0 0
    %861 = vmatpush2.bf16.msra.mxu0 0
    %862 = vmatprep.subr.bf16.mxu0 0
    %863 = vmatpush2.bf16.msra.mxu0 0
    %864 = vmatprep.subr.bf16.mxu0 0
    %865 = vmatpush2.bf16.msra.mxu0 0
    %866 = vmatprep.subr.bf16.mxu0 0
    %867 = vmatpush2.bf16.msra.mxu0 0
    %868 = vmatprep.subr.bf16.mxu0 0
    %869 = vmatpush2.bf16.msra.mxu0 0
    %870 = vmatprep.subr.bf16.mxu0 0
    %871 = vmatpush2.bf16.msra.mxu0 0
    %872 = vmatprep.mubr.bf16.mxu0 0
    %873 = vmatmul.mubr.bf16.gmra.mxu0 %v838
    %v874 = vpop.f32.mrf.mxu0
    %v875 = vadd.f32 0.0, %v874
    %v876 = vpop.f32.mrf.mxu0
    %v877 = vpop.f32.mrf.mxu0
    %v878 = vpop.f32.mrf.mxu0
    %879 = vdwg.mxu0
    %v883 = vunpack.c.l.b16 %v65
    %v884 = vunpack.c.l.b16 %v66
    %v885 = vunpack.c.l.b16 %v67
    %v886 = vpack.c.b16 %v884, %v883
    %v887 = vpack.c.b16 %v885, %v885
    %v890 = vsel %vm217, %v887, 0
    %892 = vmatprep.subr.bf16.mxu0 0
    %893 = vmatpush1.bf16.msra.mxu0 0
    %894 = vmatprep.subr.bf16.mxu0 0
    %895 = vmatpush1.bf16.msra.mxu0 0
    %896 = vmatprep.subr.bf16.mxu0 0
    %897 = vmatpush1.bf16.msra.mxu0 0
    %898 = vmatprep.subr.bf16.mxu0 0
    %899 = vmatpush1.bf16.msra.mxu0 0
    %900 = vmatprep.subr.bf16.mxu0 0
    %901 = vmatpush1.bf16.msra.mxu0 0
    %902 = vmatprep.subr.bf16.mxu0 0
    %903 = vmatpush1.bf16.msra.mxu0 0
    %904 = vmatprep.subr.bf16.mxu0 0
    %905 = vmatpush1.bf16.msra.mxu0 %v890
    %906 = vmatprep.subr.bf16.mxu0 0
    %907 = vmatpush1.bf16.msra.mxu0 %v886
    %908 = vmatprep.subr.bf16.mxu0 0
    %909 = vmatpush2.bf16.msra.mxu0 0
    %910 = vmatprep.subr.bf16.mxu0 0
    %911 = vmatpush2.bf16.msra.mxu0 0
    %912 = vmatprep.subr.bf16.mxu0 0
    %913 = vmatpush2.bf16.msra.mxu0 0
    %914 = vmatprep.subr.bf16.mxu0 0
    %915 = vmatpush2.bf16.msra.mxu0 0
    %916 = vmatprep.subr.bf16.mxu0 0
    %917 = vmatpush2.bf16.msra.mxu0 0
    %918 = vmatprep.subr.bf16.mxu0 0
    %919 = vmatpush2.bf16.msra.mxu0 0
    %920 = vmatprep.subr.bf16.mxu0 0
    %921 = vmatpush2.bf16.msra.mxu0 0
    %922 = vmatprep.subr.bf16.mxu0 0
    %923 = vmatpush2.bf16.msra.mxu0 0
    %924 = vmatprep.mubr.bf16.mxu0 0
    %925 = vmatmul.mubr.bf16.gmra.mxu0 %v215
    %v926 = vpop.f32.mrf.mxu0
    %v927 = vadd.f32 %v875, %v926
    %v928 = vpop.f32.mrf.mxu0
    %v929 = vpop.f32.mrf.mxu0
    %v930 = vpop.f32.mrf.mxu0
    %931 = vdwg.mxu0
    %v932 = vadd.f32 %v927, %v128
    %v933 = vmax.f32 %v932, 0.0
    %v934 = vpack.c.bf16 %v933, %v933
    %v939 = vunpack.c.l.b16 %v76
    %v940 = vunpack.c.l.b16 %v77
    %v941 = vunpack.c.l.b16 %v78
    %v942 = vunpack.c.l.b16 %v79
    %v943 = vpack.c.b16 %v940, %v939
    %v944 = vpack.c.b16 %v942, %v941
    %947 = vmatprep.subr.bf16.mxu0 0
    %948 = vmatpush1.bf16.msra.mxu0 0
    %949 = vmatprep.subr.bf16.mxu0 0
    %950 = vmatpush1.bf16.msra.mxu0 0
    %951 = vmatprep.subr.bf16.mxu0 0
    %952 = vmatpush1.bf16.msra.mxu0 0
    %953 = vmatprep.subr.bf16.mxu0 0
    %954 = vmatpush1.bf16.msra.mxu0 0
    %955 = vmatprep.subr.bf16.mxu0 0
    %956 = vmatpush1.bf16.msra.mxu0 0
    %957 = vmatprep.subr.bf16.mxu0 0
    %958 = vmatpush1.bf16.msra.mxu0 0
    %959 = vmatprep.subr.bf16.mxu0 0
    %960 = vmatpush1.bf16.msra.mxu0 %v944
    %961 = vmatprep.subr.bf16.mxu0 0
    %962 = vmatpush1.bf16.msra.mxu0 %v943
    %963 = vmatprep.subr.bf16.mxu0 0
    %964 = vmatpush2.bf16.msra.mxu0 0
    %965 = vmatprep.subr.bf16.mxu0 0
    %966 = vmatpush2.bf16.msra.mxu0 0
    %967 = vmatprep.subr.bf16.mxu0 0
    %968 = vmatpush2.bf16.msra.mxu0 0
    %969 = vmatprep.subr.bf16.mxu0 0
    %970 = vmatpush2.bf16.msra.mxu0 0
    %971 = vmatprep.subr.bf16.mxu0 0
    %972 = vmatpush2.bf16.msra.mxu0 0
    %973 = vmatprep.subr.bf16.mxu0 0
    %974 = vmatpush2.bf16.msra.mxu0 0
    %975 = vmatprep.subr.bf16.mxu0 0
    %976 = vmatpush2.bf16.msra.mxu0 0
    %977 = vmatprep.subr.bf16.mxu0 0
    %978 = vmatpush2.bf16.msra.mxu0 0
    %979 = vmatprep.mubr.bf16.mxu0 0
    %980 = vmatmul.mubr.bf16.gmra.mxu0 %v162
    %v981 = vpop.f32.mrf.mxu0
    %v982 = vadd.f32 0.0, %v981
    %v983 = vpop.f32.mrf.mxu0
    %v984 = vpop.f32.mrf.mxu0
    %v985 = vpop.f32.mrf.mxu0
    %986 = vdwg.mxu0
    %v991 = vunpack.c.l.b16 %v72
    %v992 = vunpack.c.l.b16 %v73
    %v993 = vunpack.c.l.b16 %v74
    %v994 = vunpack.c.l.b16 %v75
    %v995 = vpack.c.b16 %v992, %v991
    %v996 = vpack.c.b16 %v994, %v993
    %v1000 = vsel %vm160, %v934, 0
    %1002 = vmatprep.subr.bf16.mxu0 0
    %1003 = vmatpush1.bf16.msra.mxu0 0
    %1004 = vmatprep.subr.bf16.mxu0 0
    %1005 = vmatpush1.bf16.msra.mxu0 0
    %1006 = vmatprep.subr.bf16.mxu0 0
    %1007 = vmatpush1.bf16.msra.mxu0 0
    %1008 = vmatprep.subr.bf16.mxu0 0
    %1009 = vmatpush1.bf16.msra.mxu0 0
    %1010 = vmatprep.subr.bf16.mxu0 0
    %1011 = vmatpush1.bf16.msra.mxu0 0
    %1012 = vmatprep.subr.bf16.mxu0 0
    %1013 = vmatpush1.bf16.msra.mxu0 0
    %1014 = vmatprep.subr.bf16.mxu0 0
    %1015 = vmatpush1.bf16.msra.mxu0 %v996
    %1016 = vmatprep.subr.bf16.mxu0 0
    %1017 = vmatpush1.bf16.msra.mxu0 %v995
    %1018 = vmatprep.subr.bf16.mxu0 0
    %1019 = vmatpush2.bf16.msra.mxu0 0
    %1020 = vmatprep.subr.bf16.mxu0 0
    %1021 = vmatpush2.bf16.msra.mxu0 0
    %1022 = vmatprep.subr.bf16.mxu0 0
    %1023 = vmatpush2.bf16.msra.mxu0 0
    %1024 = vmatprep.subr.bf16.mxu0 0
    %1025 = vmatpush2.bf16.msra.mxu0 0
    %1026 = vmatprep.subr.bf16.mxu0 0
    %1027 = vmatpush2.bf16.msra.mxu0 0
    %1028 = vmatprep.subr.bf16.mxu0 0
    %1029 = vmatpush2.bf16.msra.mxu0 0
    %1030 = vmatprep.subr.bf16.mxu0 0
    %1031 = vmatpush2.bf16.msra.mxu0 0
    %1032 = vmatprep.subr.bf16.mxu0 0
    %1033 = vmatpush2.bf16.msra.mxu0 0
    %1034 = vmatprep.mubr.bf16.mxu0 0
    %1035 = vmatmul.mubr.bf16.gmra.mxu0 %v1000
    %v1036 = vpop.f32.mrf.mxu0
    %v1037 = vadd.f32 %v982, %v1036
    %v1038 = vpop.f32.mrf.mxu0
    %v1039 = vpop.f32.mrf.mxu0
    %v1040 = vpop.f32.mrf.mxu0
    %1041 = vdwg.mxu0
    %v1042 = vadd.f32 %v1037, %v135
    %v1043 = vxor.u32 %v1042, 2147483648
    %v1044 = vmul.f32 %v1043, 1.442695
    %v1045 = vpow.pop %v1044
    %v1046 = vadd.f32 %v1045, 1.0
    %v1047 = vrcp.pop %v1046
    %v1048 = vmul.f32 1.0, %v1047
    %v1049 = vtanh.pop %v1042
    %1051 = vrot.lane.b32.xlu0 %v145, 32
    %v1052 = vpop.permute.xlu0 %1051
    %v1054 = vmul.f32 %v1048, %v1052
    %1056 = vrot.lane.b32.xlu0 %v1049, 64
    %v1057 = vpop.permute.xlu0 %1056
    %v1059 = vmul.f32 %v1048, %v1057
    %1061 = vrot.lane.b32.xlu0 %v1059, 32
    %v1062 = vpop.permute.xlu0 %1061
    %v1064 = vadd.f32 %v1054, %v1062
    %v1065 = vtanh.pop %v1064
    %1067 = vrot.lane.b32.xlu0 %v1065, 64
    %v1068 = vpop.permute.xlu0 %1067
    %v1070 = vmul.f32 %v1048, %v1068
    %v1071 = vpack.c.bf16 %v1070, %v1070
    %1073 = vrot.lane.b32.xlu0 %v1071, 32
    %v1074 = vpop.permute.xlu0 %1073
    %v1079 = vunpack.c.l.b16 %v80
    %v1080 = vunpack.c.l.b16 %v81
    %v1081 = vunpack.c.l.b16 %v82
    %v1082 = vunpack.c.l.b16 %v83
    %v1083 = vpack.c.b16 %v1080, %v1079
    %v1084 = vpack.c.b16 %v1082, %v1081
    %v1088 = vsel %vm160, %v1074, 0
    %1090 = vmatprep.subr.bf16.mxu0 0
    %1091 = vmatpush1.bf16.msra.mxu0 0
    %1092 = vmatprep.subr.bf16.mxu0 0
    %1093 = vmatpush1.bf16.msra.mxu0 0
    %1094 = vmatprep.subr.bf16.mxu0 0
    %1095 = vmatpush1.bf16.msra.mxu0 0
    %1096 = vmatprep.subr.bf16.mxu0 0
    %1097 = vmatpush1.bf16.msra.mxu0 0
    %1098 = vmatprep.subr.bf16.mxu0 0
    %1099 = vmatpush1.bf16.msra.mxu0 0
    %1100 = vmatprep.subr.bf16.mxu0 0
    %1101 = vmatpush1.bf16.msra.mxu0 0
    %1102 = vmatprep.subr.bf16.mxu0 0
    %1103 = vmatpush1.bf16.msra.mxu0 %v1084
    %1104 = vmatprep.subr.bf16.mxu0 0
    %1105 = vmatpush1.bf16.msra.mxu0 %v1083
    %1106 = vmatprep.subr.bf16.mxu0 0
    %1107 = vmatpush2.bf16.msra.mxu0 0
    %1108 = vmatprep.subr.bf16.mxu0 0
    %1109 = vmatpush2.bf16.msra.mxu0 0
    %1110 = vmatprep.subr.bf16.mxu0 0
    %1111 = vmatpush2.bf16.msra.mxu0 0
    %1112 = vmatprep.subr.bf16.mxu0 0
    %1113 = vmatpush2.bf16.msra.mxu0 0
    %1114 = vmatprep.subr.bf16.mxu0 0
    %1115 = vmatpush2.bf16.msra.mxu0 0
    %1116 = vmatprep.subr.bf16.mxu0 0
    %1117 = vmatpush2.bf16.msra.mxu0 0
    %1118 = vmatprep.subr.bf16.mxu0 0
    %1119 = vmatpush2.bf16.msra.mxu0 0
    %1120 = vmatprep.subr.bf16.mxu0 0
    %1121 = vmatpush2.bf16.msra.mxu0 0
    %1122 = vmatprep.mubr.bf16.mxu0 0
    %1123 = vmatmul.mubr.bf16.gmra.mxu0 %v1088
    %v1124 = vpop.f32.mrf.mxu0
    %v1125 = vadd.f32 %v142, %v1124
    %v1126 = vpop.f32.mrf.mxu0
    %v1127 = vpop.f32.mrf.mxu0
    %v1128 = vpop.f32.mrf.mxu0
    %1129 = vdwg.mxu0
    %vm1130 = vcmask 392192
    %v1131 = vsel %vm1130, %v1125, -inf
    %1132 = vmax.xlane.f32.xlu0 %v1131
    %v1133 = vpop.xlane.xlu0 %1132
    %v1134 = vsub.f32 %v1125, %v1133
    %v1135 = vmul.f32 %v1134, 1.442695
    %v1136 = vpow.pop %v1135
    %v1137 = vsel %vm1130, %v1136, 0.0
    %1138 = vadd.xlane.f32.xlu0 %v1137
    %v1139 = vpop.xlane.xlu0 %1138
    %v1140 = vlog2.pop %v1139
    %v1141 = vmul.f32 %v1140, 0.6931472
    %v1142 = vsub.f32 %v1134, %v1141
    %1143 = vst.msk [vmem:[#allocation2] sm:$0xff] %vm1130, %v1142
    %1144 = vst.msk [vmem:[#allocation4] sm:$0xff] %vm160, %v272
    %1146 = vrot.lane.b32.xlu0 %v1070, 32
    %v1147 = vpop.permute.xlu0 %1146
    %1149 = vst.msk [vmem:[#allocation6] sm:$0xff] %vm160, %v1147
    %1151 = vrot.lane.b32.xlu0 %v1064, 96
    %v1152 = vpop.permute.xlu0 %1151
    %1154 = vst.msk [vmem:[#allocation7] sm:$0xff] %vm160, %v1152
    // Predicated region
    $region62: #{attn_decoder_forward.1} parent=1 // pred_check
      _
    $region63: #{attn_decoder_forward.1} parent=1 // pred_check_branch
      %1156 = sbr.rel (0) target = $region65
    $region64: #{attn_decoder_forward.1} parent=1 // pred_region
      %s1158 = ssub.s32 128, 128
      %1159 = vsyncadd [#allocation3], %s1158
      %s1161 = sshll.u32 [#allocation2], 4
      %s1162 = int_to_ptr.vmem [resolvable:$true] %s1161
      %1164 = dma.vmem_to_hbm [thread:$0]  %s1162, 128, %s15, [#allocation3]
    $region65: #{attn_decoder_forward.1} parent=1 // pred_fallthru
      _
    // Predicated region
    $region66: #{attn_decoder_forward.1} parent=1 // pred_check
      _
    $region67: #{attn_decoder_forward.1} parent=1 // pred_check_branch
      %1166 = sbr.rel (0) target = $region69
    $region68: #{attn_decoder_forward.1} parent=1 // pred_region
      %s1168 = ssub.s32 128, 128
      %1169 = vsyncadd [#allocation5], %s1168
      %s1171 = sshll.u32 [#allocation4], 4
      %s1172 = int_to_ptr.vmem [resolvable:$true] %s1171
      %1174 = dma.vmem_to_hbm [thread:$0]  %s1172, 128, %s16, [#allocation5]
    $region69: #{attn_decoder_forward.1} parent=1 // pred_fallthru
      _
    // Predicated region
    $region70: #{attn_decoder_forward.1} parent=1 // pred_check
      _
    $region71: #{attn_decoder_forward.1} parent=1 // pred_check_branch
      %1176 = sbr.rel (0) target = $region73
    $region72: #{attn_decoder_forward.1} parent=1 // pred_region
      %s1178 = ssub.s32 128, 128
      %1179 = vsyncadd [#allocation5], %s1178
      %s1181 = sshll.u32 [#allocation6], 4
      %s1182 = int_to_ptr.vmem [resolvable:$true] %s1181
      %1184 = dma.vmem_to_hbm [thread:$0]  %s1182, 128, %s17, [#allocation5]
    $region73: #{attn_decoder_forward.1} parent=1 // pred_fallthru
      _
    // Predicated region
    $region74: #{attn_decoder_forward.1} parent=1 // pred_check
      _
    $region75: #{attn_decoder_forward.1} parent=1 // pred_check_branch
      %1186 = sbr.rel (0) target = $region77
    $region76: #{attn_decoder_forward.1} parent=1 // pred_region
      %s1188 = ssub.s32 128, 128
      %1189 = vsyncadd [#allocation8], %s1188
      %s1191 = sshll.u32 [#allocation7], 4
      %s1192 = int_to_ptr.vmem [resolvable:$true] %s1191
      %1194 = dma.vmem_to_hbm [thread:$0]  %s1192, 128, %s18, [#allocation8]
    $region77: #{attn_decoder_forward.1} parent=1 // pred_fallthru
      _
    // Predicated region
    $region78: #{attn_decoder_forward.1} parent=1 // pred_check
      _
    $region79: #{attn_decoder_forward.1} parent=1 // pred_check_branch
      %1196 = sbr.rel (0) target = $region81
    $region80: #{attn_decoder_forward.1} parent=1 // pred_region
      %1197 = dma.done [#allocation3], 128
    $region81: #{attn_decoder_forward.1} parent=1 // pred_fallthru
      _
    // Predicated region
    $region82: #{attn_decoder_forward.1} parent=1 // pred_check
      _
    $region83: #{attn_decoder_forward.1} parent=1 // pred_check_branch
      %1199 = sbr.rel (0) target = $region85
    $region84: #{attn_decoder_forward.1} parent=1 // pred_region
      %1200 = dma.done [#allocation5], 128
    $region85: #{attn_decoder_forward.1} parent=1 // pred_fallthru
      _
    // Predicated region
    $region86: #{attn_decoder_forward.1} parent=1 // pred_check
      _
    $region87: #{attn_decoder_forward.1} parent=1 // pred_check_branch
      %1202 = sbr.rel (0) target = $region89
    $region88: #{attn_decoder_forward.1} parent=1 // pred_region
      %1203 = dma.done [#allocation5], 128
    $region89: #{attn_decoder_forward.1} parent=1 // pred_fallthru
      _
    // Predicated region
    $region90: #{attn_decoder_forward.1} parent=1 // pred_check
      _
    $region91: #{attn_decoder_forward.1} parent=1 // pred_check_branch
      %1205 = sbr.rel (0) target = $region93
    $region92: #{attn_decoder_forward.1} parent=1 // pred_region
      %1206 = dma.done [#allocation8], 128
    $region93: #{attn_decoder_forward.1} parent=1 // pred_fallthru
      _
    %1207 = vsyncpa [#allocation3], 1
    %1208 = vsyncpa [#allocation5], 1
    %1209 = vsyncpa [#allocation8], 1

</llo_original>
